<compile_context>
chip_gen: v5e
topology: v5e:2x2
jax: 0.10.0
libtpu: 0.0.40
codegen_flags: <defaults>
</compile_context>

<pallas_src>
import functools
import math

import jax
import jax.numpy as jnp
from jax.experimental import pallas as pl
from jax.experimental.pallas import tpu as pltpu

# Small config consistent with the module: n_embd % n_head == 0.
B, T, C, N_HEAD = 2, 8, 128, 4
HD = C // N_HEAD  # head dim = 32


# ---------------------------------------------------------------------------
# shared math helpers (used by both the kernel and the pure-JAX reference)
# ---------------------------------------------------------------------------
def _layernorm(x, g, b, eps=1e-5):
    mu = jnp.mean(x, axis=-1, keepdims=True)
    xc = x - mu
    var = jnp.mean(xc * xc, axis=-1, keepdims=True)
    return xc * jax.lax.rsqrt(var + eps) * g + b


def _gelu_tanh(x):
    # TODO(synk): torch nn.GELU() defaults to the exact erf form; tanh approx
    # used here (and in the in-script reference), max abs deviation ~1e-3.
    c = 0.7978845608028654  # sqrt(2/pi)
    return 0.5 * x * (1.0 + jnp.tanh(c * (x + 0.044715 * x * x * x)))


# ---------------------------------------------------------------------------
# kernel: full Block forward for all (B*T) rows in one grid step
# ---------------------------------------------------------------------------
def block_kernel(x_ref, bias_ref, g1_ref, b1_ref,
                 wq_ref, bq_ref, wk_ref, bk_ref, wv_ref, bv_ref,
                 wo_ref, bo_ref, g2_ref, b2_ref,
                 wfc_ref, bfc_ref, wpr_ref, bpr_ref, o_ref):
    f32 = jnp.float32
    x = x_ref[...].astype(f32)                       # (N, C), N = B*T
    n_head = wq_ref.shape[0]
    hd = wq_ref.shape[2]
    scale = 1.0 / math.sqrt(hd)

    # ---- ln_1 ----
    xn = _layernorm(x, g1_ref[...], b1_ref[...])

    # ---- causal self-attention ----
    # Scores are computed over the flattened (B*T) rows with a block-diagonal
    # causal additive bias (precomputed wrapper-side).  This recomputes the
    # (negligible) cross-batch score flops but keeps every op a dense 2-D
    # matmul: no per-batch slicing, no lane slicing, no concatenation.
    bias = bias_ref[...]                             # (N, N), 0 or -1e30
    acc = jnp.zeros((x.shape[0], wo_ref.shape[2]), f32)
    for h in range(n_head):                          # static unroll over heads
        qh = jnp.dot(xn, wq_ref[h], preferred_element_type=f32) + bq_ref[h]
        kh = jnp.dot(xn, wk_ref[h], preferred_element_type=f32) + bk_ref[h]
        vh = jnp.dot(xn, wv_ref[h], preferred_element_type=f32) + bv_ref[h]
        # q @ k^T without an explicit transpose (contract last dims).
        s = jax.lax.dot_general(qh, kh, (((1,), (1,)), ((), ())),
                                preferred_element_type=f32) * scale + bias
        s = s - jnp.max(s, axis=-1, keepdims=True)
        p = jnp.exp(s)
        p = p / jnp.sum(p, axis=-1, keepdims=True)
        yh = jnp.dot(p, vh, preferred_element_type=f32)            # (N, HD)
        # head merge folded into the output projection (head-major W_proj row
        # block) -- accumulate directly into the (N, C) result, no concat.
        acc = acc + jnp.dot(yh, wo_ref[h], preferred_element_type=f32)
    x1 = x + acc + bo_ref[...]                       # residual 1

    # ---- ln_2 + MLP (GELU) ----
    xn2 = _layernorm(x1, g2_ref[...], b2_ref[...])
    hid = jnp.dot(xn2, wfc_ref[...], preferred_element_type=f32) + bfc_ref[...]
    hid = _gelu_tanh(hid)
    mlp = jnp.dot(hid, wpr_ref[...], preferred_element_type=f32) + bpr_ref[...]

    o_ref[...] = (x1 + mlp).astype(o_ref.dtype)      # residual 2


# ---------------------------------------------------------------------------
# wrapper
# ---------------------------------------------------------------------------
def _full_spec(shape):
    nd = len(shape)
    return pl.BlockSpec(shape, lambda i, _nd=nd: (0,) * _nd)


@functools.partial(jax.jit, static_argnames=("n_head",))
def block_forward(x, params, *, n_head):
    (w_attn, b_attn, w_o, b_o, g1, be1, g2, be2, w_fc, b_fc, w_pr, b_pr) = params
    bsz, t, c = x.shape
    hd = c // n_head
    n = bsz * t
    hidden = w_fc.shape[1]

    # Free wrapper-side repacking to head-major layouts (no in-kernel lane work).
    wq, wk, wv = jnp.split(w_attn, 3, axis=1)                    # (C, C) each
    wq = wq.reshape(c, n_head, hd).transpose(1, 0, 2)            # (H, C, HD)
    wk = wk.reshape(c, n_head, hd).transpose(1, 0, 2)
    wv = wv.reshape(c, n_head, hd).transpose(1, 0, 2)
    bq, bk, bv = jnp.split(b_attn, 3)
    bq = bq.reshape(n_head, 1, hd)
    bk = bk.reshape(n_head, 1, hd)
    bv = bv.reshape(n_head, 1, hd)
    wo = w_o.reshape(n_head, hd, c)                               # (H, HD, C)

    # Block-diagonal causal additive mask over the flattened (B*T) rows;
    # finite value instead of -inf (review correctness concern).
    r = jnp.arange(n)
    same_batch = (r[:, None] // t) == (r[None, :] // t)
    causal = r[:, None] >= r[None, :]
    attn_bias = jnp.where(same_batch & causal, 0.0, -1e30).astype(jnp.float32)

    args = (
        x.reshape(n, c), attn_bias,                               # lane-dense x slab
        g1.reshape(1, c), be1.reshape(1, c),
        wq, bq, wk, bk, wv, bv,
        wo, b_o.reshape(1, c),
        g2.reshape(1, c), be2.reshape(1, c),
        w_fc, b_fc.reshape(1, hidden),
        w_pr, b_pr.reshape(1, c),
    )

    # Advisory cost hint for the XLA scheduler around this short custom call.
    flops = (2 * n * c * 3 * c                    # qkv projection
             + 2 * n_head * 2 * n * n * hd        # scores + p@v
             + 2 * n * c * c                      # attention output projection
             + 2 * 2 * n * c * hidden)            # MLP c_fc + c_proj
    transcendentals = n_head * n * n + n * hidden + 2 * n
    bytes_accessed = (sum(a.size * a.dtype.itemsize for a in args)
                      + n * c * x.dtype.itemsize)

    out = pl.pallas_call(
        block_kernel,
        out_shape=jax.ShapeDtypeStruct((n, c), x.dtype),
        grid=(1,),  # single step: whole problem (<1 MiB) is VMEM-resident
        in_specs=[_full_spec(a.shape) for a in args],
        out_specs=_full_spec((n, c)),
        compiler_params=pltpu.CompilerParams(dimension_semantics=("arbitrary",)),
        cost_estimate=pl.CostEstimate(flops=flops,
                                      transcendentals=transcendentals,
                                      bytes_accessed=bytes_accessed),
    )(*args)
    return out.reshape(bsz, t, c)


# ---------------------------------------------------------------------------
# pure-JAX reference mirroring the PyTorch Block forward (dropout = 0)
# ---------------------------------------------------------------------------
def reference(x, params, *, n_head):
    (w_attn, b_attn, w_o, b_o, g1, be1, g2, be2, w_fc, b_fc, w_pr, b_pr) = params
    bsz, t, c = x.shape
    hd = c // n_head
    xn = _layernorm(x, g1, be1)
    qkv = xn @ w_attn + b_attn
    q, k, v = jnp.split(qkv, 3, axis=-1)
    q = q.reshape(bsz, t, n_head, hd).transpose(0, 2, 1, 3)
    k = k.reshape(bsz, t, n_head, hd).transpose(0, 2, 1, 3)
    v = v.reshape(bsz, t, n_head, hd).transpose(0, 2, 1, 3)
    att = jnp.einsum("bhtd,bhsd->bhts", q, k) / math.sqrt(hd)
    mask = jnp.tril(jnp.ones((t, t), dtype=bool))
    att = jnp.where(mask, att, -jnp.inf)
    att = jax.nn.softmax(att, axis=-1)
    y = jnp.einsum("bhts,bhsd->bhtd", att, v)
    y = y.transpose(0, 2, 1, 3).reshape(bsz, t, c)
    x1 = x + (y @ w_o + b_o)
    xn2 = _layernorm(x1, g2, be2)
    h = _gelu_tanh(xn2 @ w_fc + b_fc)
    return x1 + (h @ w_pr + b_pr)


if __name__ == "__main__":
    key = jax.random.PRNGKey(0)
    ks = jax.random.split(key, 13)

    x = jax.random.normal(ks[0], (B, T, C), dtype=jnp.float32)

    # PyTorch-style init; Linear weights stored pre-transposed as (in, out).
    bnd_c = 1.0 / math.sqrt(C)
    bnd_h = 1.0 / math.sqrt(4 * C)
    w_attn = jax.random.uniform(ks[1], (C, 3 * C), jnp.float32, -bnd_c, bnd_c)
    b_attn = jax.random.uniform(ks[2], (3 * C,), jnp.float32, -bnd_c, bnd_c)
    w_o = jax.random.uniform(ks[3], (C, C), jnp.float32, -bnd_c, bnd_c)
    b_o = jax.random.uniform(ks[4], (C,), jnp.float32, -bnd_c, bnd_c)
    g1 = 1.0 + 0.1 * jax.random.normal(ks[5], (C,), jnp.float32)
    be1 = 0.1 * jax.random.normal(ks[6], (C,), jnp.float32)
    g2 = 1.0 + 0.1 * jax.random.normal(ks[7], (C,), jnp.float32)
    be2 = 0.1 * jax.random.normal(ks[8], (C,), jnp.float32)
    w_fc = jax.random.uniform(ks[9], (C, 4 * C), jnp.float32, -bnd_c, bnd_c)
    b_fc = jax.random.uniform(ks[10], (4 * C,), jnp.float32, -bnd_c, bnd_c)
    w_pr = jax.random.uniform(ks[11], (4 * C, C), jnp.float32, -bnd_h, bnd_h)
    b_pr = jax.random.uniform(ks[12], (C,), jnp.float32, -bnd_h, bnd_h)

    params = (w_attn, b_attn, w_o, b_o, g1, be1, g2, be2, w_fc, b_fc, w_pr, b_pr)

    out = block_forward(x, params, n_head=N_HEAD)
    out = jax.block_until_ready(out)

    ref = reference(x, params, n_head=N_HEAD)
    assert out.shape == (B, T, C)
    assert jnp.allclose(out, ref, atol=2e-3, rtol=2e-3), "mismatch vs pure-JAX reference"

    print("KERNEL_OK")
</pallas_src>

<mosaic_0001>
module attributes {stable_mosaic.version = 11 : i64} {
  func.func @block_kernel(%arg0: i32, %arg1: memref<16x128xf32, #tpu.memory_space<vmem>>, %arg2: memref<16x16xf32, #tpu.memory_space<vmem>>, %arg3: memref<1x128xf32, #tpu.memory_space<vmem>>, %arg4: memref<1x128xf32, #tpu.memory_space<vmem>>, %arg5: memref<4x128x32xf32, #tpu.memory_space<vmem>>, %arg6: memref<4x1x32xf32, #tpu.memory_space<vmem>>, %arg7: memref<4x128x32xf32, #tpu.memory_space<vmem>>, %arg8: memref<4x1x32xf32, #tpu.memory_space<vmem>>, %arg9: memref<4x128x32xf32, #tpu.memory_space<vmem>>, %arg10: memref<4x1x32xf32, #tpu.memory_space<vmem>>, %arg11: memref<4x32x128xf32, #tpu.memory_space<vmem>>, %arg12: memref<1x128xf32, #tpu.memory_space<vmem>>, %arg13: memref<1x128xf32, #tpu.memory_space<vmem>>, %arg14: memref<1x128xf32, #tpu.memory_space<vmem>>, %arg15: memref<128x512xf32, #tpu.memory_space<vmem>>, %arg16: memref<1x512xf32, #tpu.memory_space<vmem>>, %arg17: memref<512x128xf32, #tpu.memory_space<vmem>>, %arg18: memref<1x128xf32, #tpu.memory_space<vmem>>, %arg19: memref<16x128xf32, #tpu.memory_space<vmem>>) attributes {dimension_semantics = [#tpu.dimension_semantics<arbitrary>], iteration_bounds = array<i64: 1>, scalar_prefetch = 0 : i64, scratch_operands = 0 : i64, tpu.core_type = #tpu.core_type<tc>, window_params = [{pipeline_mode = #tpu.pipeline_mode<synchronous>, transform_indices = @transform_0, window_bounds = array<i64: 16, 128>}, {pipeline_mode = #tpu.pipeline_mode<synchronous>, transform_indices = @transform_1, window_bounds = array<i64: 16, 16>}, {pipeline_mode = #tpu.pipeline_mode<synchronous>, transform_indices = @transform_2, window_bounds = array<i64: 1, 128>}, {pipeline_mode = #tpu.pipeline_mode<synchronous>, transform_indices = @transform_3, window_bounds = array<i64: 1, 128>}, {pipeline_mode = #tpu.pipeline_mode<synchronous>, transform_indices = @transform_4, window_bounds = array<i64: 4, 128, 32>}, {pipeline_mode = #tpu.pipeline_mode<synchronous>, transform_indices = @transform_5, window_bounds = array<i64: 4, 1, 32>}, {pipeline_mode = #tpu.pipeline_mode<synchronous>, transform_indices = @transform_6, window_bounds = array<i64: 4, 128, 32>}, {pipeline_mode = #tpu.pipeline_mode<synchronous>, transform_indices = @transform_7, window_bounds = array<i64: 4, 1, 32>}, {pipeline_mode = #tpu.pipeline_mode<synchronous>, transform_indices = @transform_8, window_bounds = array<i64: 4, 128, 32>}, {pipeline_mode = #tpu.pipeline_mode<synchronous>, transform_indices = @transform_9, window_bounds = array<i64: 4, 1, 32>}, {pipeline_mode = #tpu.pipeline_mode<synchronous>, transform_indices = @transform_10, window_bounds = array<i64: 4, 32, 128>}, {pipeline_mode = #tpu.pipeline_mode<synchronous>, transform_indices = @transform_11, window_bounds = array<i64: 1, 128>}, {pipeline_mode = #tpu.pipeline_mode<synchronous>, transform_indices = @transform_12, window_bounds = array<i64: 1, 128>}, {pipeline_mode = #tpu.pipeline_mode<synchronous>, transform_indices = @transform_13, window_bounds = array<i64: 1, 128>}, {pipeline_mode = #tpu.pipeline_mode<synchronous>, transform_indices = @transform_14, window_bounds = array<i64: 128, 512>}, {pipeline_mode = #tpu.pipeline_mode<synchronous>, transform_indices = @transform_15, window_bounds = array<i64: 1, 512>}, {pipeline_mode = #tpu.pipeline_mode<synchronous>, transform_indices = @transform_16, window_bounds = array<i64: 512, 128>}, {pipeline_mode = #tpu.pipeline_mode<synchronous>, transform_indices = @transform_17, window_bounds = array<i64: 1, 128>}, {pipeline_mode = #tpu.pipeline_mode<synchronous>, transform_indices = @transform_18, window_bounds = array<i64: 16, 128>}]} {
    %c0 = arith.constant 0 : index
    %c0_0 = arith.constant 0 : index
    %0 = vector.load %arg1[%c0, %c0_0] : memref<16x128xf32, #tpu.memory_space<vmem>>, vector<16x128xf32>
    %c0_1 = arith.constant 0 : index
    %c0_2 = arith.constant 0 : index
    %1 = vector.load %arg3[%c0_1, %c0_2] : memref<1x128xf32, #tpu.memory_space<vmem>>, vector<1x128xf32>
    %c0_3 = arith.constant 0 : index
    %c0_4 = arith.constant 0 : index
    %2 = vector.load %arg4[%c0_3, %c0_4] : memref<1x128xf32, #tpu.memory_space<vmem>>, vector<1x128xf32>
    %cst = arith.constant dense<0.000000e+00> : vector<16xf32>
    %3 = vector.multi_reduction <add>, %0, %cst [1] : vector<16x128xf32> to vector<16xf32>
    %4 = vector.shape_cast %3 : vector<16xf32> to vector<16x1xf32>
    %cst_5 = arith.constant 1.280000e+02 : f32
    %5 = vector.broadcast %cst_5 : f32 to vector<16x1xf32>
    %6 = arith.divf %4, %5 : vector<16x1xf32>
    %7 = vector.broadcast %6 : vector<16x1xf32> to vector<16x128xf32>
    %8 = arith.subf %0, %7 : vector<16x128xf32>
    %9 = arith.mulf %8, %8 : vector<16x128xf32>
    %cst_6 = arith.constant dense<0.000000e+00> : vector<16xf32>
    %10 = vector.multi_reduction <add>, %9, %cst_6 [1] : vector<16x128xf32> to vector<16xf32>
    %11 = vector.shape_cast %10 : vector<16xf32> to vector<16x1xf32>
    %cst_7 = arith.constant 1.280000e+02 : f32
    %12 = vector.broadcast %cst_7 : f32 to vector<16x1xf32>
    %13 = arith.divf %11, %12 : vector<16x1xf32>
    %cst_8 = arith.constant 9.99999974E-6 : f32
    %14 = vector.broadcast %cst_8 : f32 to vector<16x1xf32>
    %15 = arith.addf %13, %14 : vector<16x1xf32>
    %16 = math.rsqrt %15 : vector<16x1xf32>
    %17 = vector.broadcast %16 : vector<16x1xf32> to vector<16x128xf32>
    %18 = arith.mulf %8, %17 : vector<16x128xf32>
    %19 = vector.broadcast %1 : vector<1x128xf32> to vector<16x128xf32>
    %20 = arith.mulf %18, %19 : vector<16x128xf32>
    %21 = vector.broadcast %2 : vector<1x128xf32> to vector<16x128xf32>
    %22 = arith.addf %20, %21 : vector<16x128xf32>
    %c0_9 = arith.constant 0 : index
    %c0_10 = arith.constant 0 : index
    %23 = vector.load %arg2[%c0_9, %c0_10] : memref<16x16xf32, #tpu.memory_space<vmem>>, vector<16x16xf32>
    %cst_11 = arith.constant 0.000000e+00 : f32
    %24 = vector.broadcast %cst_11 : f32 to vector<16x128xf32>
    %c0_12 = arith.constant 0 : index
    %c0_13 = arith.constant 0 : index
    %c0_14 = arith.constant 0 : index
    %25 = vector.load %arg5[%c0_12, %c0_13, %c0_14] : memref<4x128x32xf32, #tpu.memory_space<vmem>>, vector<1x128x32xf32>
    %26 = vector.shape_cast %25 : vector<1x128x32xf32> to vector<128x32xf32>
    %cst_15 = arith.constant dense<0.000000e+00> : vector<16x32xf32>
    %27 = tpu.matmul %22, %26, %cst_15 {dimension_numbers = #tpu.dot_dimension_numbers<[1], [0], [0], [1], [0, 0, 1, 1], [], []>} : vector<16x128xf32>, vector<128x32xf32>, vector<16x32xf32> -> vector<16x32xf32>
    %c0_16 = arith.constant 0 : index
    %c0_17 = arith.constant 0 : index
    %c0_18 = arith.constant 0 : index
    %28 = vector.load %arg6[%c0_16, %c0_17, %c0_18] : memref<4x1x32xf32, #tpu.memory_space<vmem>>, vector<1x1x32xf32>
    %29 = vector.shape_cast %28 : vector<1x1x32xf32> to vector<1x32xf32>
    %30 = vector.broadcast %29 : vector<1x32xf32> to vector<16x32xf32>
    %31 = arith.addf %27, %30 : vector<16x32xf32>
    %c0_19 = arith.constant 0 : index
    %c0_20 = arith.constant 0 : index
    %c0_21 = arith.constant 0 : index
    %32 = vector.load %arg7[%c0_19, %c0_20, %c0_21] : memref<4x128x32xf32, #tpu.memory_space<vmem>>, vector<1x128x32xf32>
    %33 = vector.shape_cast %32 : vector<1x128x32xf32> to vector<128x32xf32>
    %cst_22 = arith.constant dense<0.000000e+00> : vector<16x32xf32>
    %34 = tpu.matmul %22, %33, %cst_22 {dimension_numbers = #tpu.dot_dimension_numbers<[1], [0], [0], [1], [0, 0, 1, 1], [], []>} : vector<16x128xf32>, vector<128x32xf32>, vector<16x32xf32> -> vector<16x32xf32>
    %c0_23 = arith.constant 0 : index
    %c0_24 = arith.constant 0 : index
    %c0_25 = arith.constant 0 : index
    %35 = vector.load %arg8[%c0_23, %c0_24, %c0_25] : memref<4x1x32xf32, #tpu.memory_space<vmem>>, vector<1x1x32xf32>
    %36 = vector.shape_cast %35 : vector<1x1x32xf32> to vector<1x32xf32>
    %37 = vector.broadcast %36 : vector<1x32xf32> to vector<16x32xf32>
    %38 = arith.addf %34, %37 : vector<16x32xf32>
    %c0_26 = arith.constant 0 : index
    %c0_27 = arith.constant 0 : index
    %c0_28 = arith.constant 0 : index
    %39 = vector.load %arg9[%c0_26, %c0_27, %c0_28] : memref<4x128x32xf32, #tpu.memory_space<vmem>>, vector<1x128x32xf32>
    %40 = vector.shape_cast %39 : vector<1x128x32xf32> to vector<128x32xf32>
    %cst_29 = arith.constant dense<0.000000e+00> : vector<16x32xf32>
    %41 = tpu.matmul %22, %40, %cst_29 {dimension_numbers = #tpu.dot_dimension_numbers<[1], [0], [0], [1], [0, 0, 1, 1], [], []>} : vector<16x128xf32>, vector<128x32xf32>, vector<16x32xf32> -> vector<16x32xf32>
    %c0_30 = arith.constant 0 : index
    %c0_31 = arith.constant 0 : index
    %c0_32 = arith.constant 0 : index
    %42 = vector.load %arg10[%c0_30, %c0_31, %c0_32] : memref<4x1x32xf32, #tpu.memory_space<vmem>>, vector<1x1x32xf32>
    %43 = vector.shape_cast %42 : vector<1x1x32xf32> to vector<1x32xf32>
    %44 = vector.broadcast %43 : vector<1x32xf32> to vector<16x32xf32>
    %45 = arith.addf %41, %44 : vector<16x32xf32>
    %cst_33 = arith.constant dense<0.000000e+00> : vector<16x16xf32>
    %46 = tpu.matmul %31, %38, %cst_33 {dimension_numbers = #tpu.dot_dimension_numbers<[1], [1], [0], [0], [0, 0, 1, 0], [], []>} : vector<16x32xf32>, vector<16x32xf32>, vector<16x16xf32> -> vector<16x16xf32>
    %cst_34 = arith.constant 0.176776692 : f32
    %47 = vector.broadcast %cst_34 : f32 to vector<16x16xf32>
    %48 = arith.mulf %46, %47 : vector<16x16xf32>
    %49 = arith.addf %48, %23 : vector<16x16xf32>
    %cst_35 = arith.constant dense<0xFF800000> : vector<16xf32>
    %50 = vector.multi_reduction <maximumf>, %49, %cst_35 [1] : vector<16x16xf32> to vector<16xf32>
    %51 = vector.shape_cast %50 : vector<16xf32> to vector<16x1xf32>
    %52 = vector.broadcast %51 : vector<16x1xf32> to vector<16x16xf32>
    %53 = arith.subf %49, %52 : vector<16x16xf32>
    %54 = math.exp %53 : vector<16x16xf32>
    %cst_36 = arith.constant dense<0.000000e+00> : vector<16xf32>
    %55 = vector.multi_reduction <add>, %54, %cst_36 [1] : vector<16x16xf32> to vector<16xf32>
    %56 = vector.shape_cast %55 : vector<16xf32> to vector<16x1xf32>
    %57 = vector.broadcast %56 : vector<16x1xf32> to vector<16x16xf32>
    %58 = arith.divf %54, %57 : vector<16x16xf32>
    %cst_37 = arith.constant dense<0.000000e+00> : vector<16x32xf32>
    %59 = tpu.matmul %58, %45, %cst_37 {dimension_numbers = #tpu.dot_dimension_numbers<[1], [0], [0], [1], [0, 0, 1, 1], [], []>} : vector<16x16xf32>, vector<16x32xf32>, vector<16x32xf32> -> vector<16x32xf32>
    %c0_38 = arith.constant 0 : index
    %c0_39 = arith.constant 0 : index
    %c0_40 = arith.constant 0 : index
    %60 = vector.load %arg11[%c0_38, %c0_39, %c0_40] : memref<4x32x128xf32, #tpu.memory_space<vmem>>, vector<1x32x128xf32>
    %61 = vector.shape_cast %60 : vector<1x32x128xf32> to vector<32x128xf32>
    %cst_41 = arith.constant dense<0.000000e+00> : vector<16x128xf32>
    %62 = tpu.matmul %59, %61, %cst_41 {dimension_numbers = #tpu.dot_dimension_numbers<[1], [0], [0], [1], [0, 0, 1, 1], [], []>} : vector<16x32xf32>, vector<32x128xf32>, vector<16x128xf32> -> vector<16x128xf32>
    %63 = arith.addf %24, %62 : vector<16x128xf32>
    %c1 = arith.constant 1 : index
    %c0_42 = arith.constant 0 : index
    %c0_43 = arith.constant 0 : index
    %64 = vector.load %arg5[%c1, %c0_42, %c0_43] : memref<4x128x32xf32, #tpu.memory_space<vmem>>, vector<1x128x32xf32>
    %65 = vector.shape_cast %64 : vector<1x128x32xf32> to vector<128x32xf32>
    %cst_44 = arith.constant dense<0.000000e+00> : vector<16x32xf32>
    %66 = tpu.matmul %22, %65, %cst_44 {dimension_numbers = #tpu.dot_dimension_numbers<[1], [0], [0], [1], [0, 0, 1, 1], [], []>} : vector<16x128xf32>, vector<128x32xf32>, vector<16x32xf32> -> vector<16x32xf32>
    %c1_45 = arith.constant 1 : index
    %c0_46 = arith.constant 0 : index
    %c0_47 = arith.constant 0 : index
    %67 = vector.load %arg6[%c1_45, %c0_46, %c0_47] : memref<4x1x32xf32, #tpu.memory_space<vmem>>, vector<1x1x32xf32>
    %68 = vector.shape_cast %67 : vector<1x1x32xf32> to vector<1x32xf32>
    %69 = vector.broadcast %68 : vector<1x32xf32> to vector<16x32xf32>
    %70 = arith.addf %66, %69 : vector<16x32xf32>
    %c1_48 = arith.constant 1 : index
    %c0_49 = arith.constant 0 : index
    %c0_50 = arith.constant 0 : index
    %71 = vector.load %arg7[%c1_48, %c0_49, %c0_50] : memref<4x128x32xf32, #tpu.memory_space<vmem>>, vector<1x128x32xf32>
    %72 = vector.shape_cast %71 : vector<1x128x32xf32> to vector<128x32xf32>
    %cst_51 = arith.constant dense<0.000000e+00> : vector<16x32xf32>
    %73 = tpu.matmul %22, %72, %cst_51 {dimension_numbers = #tpu.dot_dimension_numbers<[1], [0], [0], [1], [0, 0, 1, 1], [], []>} : vector<16x128xf32>, vector<128x32xf32>, vector<16x32xf32> -> vector<16x32xf32>
    %c1_52 = arith.constant 1 : index
    %c0_53 = arith.constant 0 : index
    %c0_54 = arith.constant 0 : index
    %74 = vector.load %arg8[%c1_52, %c0_53, %c0_54] : memref<4x1x32xf32, #tpu.memory_space<vmem>>, vector<1x1x32xf32>
    %75 = vector.shape_cast %74 : vector<1x1x32xf32> to vector<1x32xf32>
    %76 = vector.broadcast %75 : vector<1x32xf32> to vector<16x32xf32>
    %77 = arith.addf %73, %76 : vector<16x32xf32>
    %c1_55 = arith.constant 1 : index
    %c0_56 = arith.constant 0 : index
    %c0_57 = arith.constant 0 : index
    %78 = vector.load %arg9[%c1_55, %c0_56, %c0_57] : memref<4x128x32xf32, #tpu.memory_space<vmem>>, vector<1x128x32xf32>
    %79 = vector.shape_cast %78 : vector<1x128x32xf32> to vector<128x32xf32>
    %cst_58 = arith.constant dense<0.000000e+00> : vector<16x32xf32>
    %80 = tpu.matmul %22, %79, %cst_58 {dimension_numbers = #tpu.dot_dimension_numbers<[1], [0], [0], [1], [0, 0, 1, 1], [], []>} : vector<16x128xf32>, vector<128x32xf32>, vector<16x32xf32> -> vector<16x32xf32>
    %c1_59 = arith.constant 1 : index
    %c0_60 = arith.constant 0 : index
    %c0_61 = arith.constant 0 : index
    %81 = vector.load %arg10[%c1_59, %c0_60, %c0_61] : memref<4x1x32xf32, #tpu.memory_space<vmem>>, vector<1x1x32xf32>
    %82 = vector.shape_cast %81 : vector<1x1x32xf32> to vector<1x32xf32>
    %83 = vector.broadcast %82 : vector<1x32xf32> to vector<16x32xf32>
    %84 = arith.addf %80, %83 : vector<16x32xf32>
    %cst_62 = arith.constant dense<0.000000e+00> : vector<16x16xf32>
    %85 = tpu.matmul %70, %77, %cst_62 {dimension_numbers = #tpu.dot_dimension_numbers<[1], [1], [0], [0], [0, 0, 1, 0], [], []>} : vector<16x32xf32>, vector<16x32xf32>, vector<16x16xf32> -> vector<16x16xf32>
    %cst_63 = arith.constant 0.176776692 : f32
    %86 = vector.broadcast %cst_63 : f32 to vector<16x16xf32>
    %87 = arith.mulf %85, %86 : vector<16x16xf32>
    %88 = arith.addf %87, %23 : vector<16x16xf32>
    %cst_64 = arith.constant dense<0xFF800000> : vector<16xf32>
    %89 = vector.multi_reduction <maximumf>, %88, %cst_64 [1] : vector<16x16xf32> to vector<16xf32>
    %90 = vector.shape_cast %89 : vector<16xf32> to vector<16x1xf32>
    %91 = vector.broadcast %90 : vector<16x1xf32> to vector<16x16xf32>
    %92 = arith.subf %88, %91 : vector<16x16xf32>
    %93 = math.exp %92 : vector<16x16xf32>
    %cst_65 = arith.constant dense<0.000000e+00> : vector<16xf32>
    %94 = vector.multi_reduction <add>, %93, %cst_65 [1] : vector<16x16xf32> to vector<16xf32>
    %95 = vector.shape_cast %94 : vector<16xf32> to vector<16x1xf32>
    %96 = vector.broadcast %95 : vector<16x1xf32> to vector<16x16xf32>
    %97 = arith.divf %93, %96 : vector<16x16xf32>
    %cst_66 = arith.constant dense<0.000000e+00> : vector<16x32xf32>
    %98 = tpu.matmul %97, %84, %cst_66 {dimension_numbers = #tpu.dot_dimension_numbers<[1], [0], [0], [1], [0, 0, 1, 1], [], []>} : vector<16x16xf32>, vector<16x32xf32>, vector<16x32xf32> -> vector<16x32xf32>
    %c1_67 = arith.constant 1 : index
    %c0_68 = arith.constant 0 : index
    %c0_69 = arith.constant 0 : index
    %99 = vector.load %arg11[%c1_67, %c0_68, %c0_69] : memref<4x32x128xf32, #tpu.memory_space<vmem>>, vector<1x32x128xf32>
    %100 = vector.shape_cast %99 : vector<1x32x128xf32> to vector<32x128xf32>
    %cst_70 = arith.constant dense<0.000000e+00> : vector<16x128xf32>
    %101 = tpu.matmul %98, %100, %cst_70 {dimension_numbers = #tpu.dot_dimension_numbers<[1], [0], [0], [1], [0, 0, 1, 1], [], []>} : vector<16x32xf32>, vector<32x128xf32>, vector<16x128xf32> -> vector<16x128xf32>
    %102 = arith.addf %63, %101 : vector<16x128xf32>
    %c2 = arith.constant 2 : index
    %c0_71 = arith.constant 0 : index
    %c0_72 = arith.constant 0 : index
    %103 = vector.load %arg5[%c2, %c0_71, %c0_72] : memref<4x128x32xf32, #tpu.memory_space<vmem>>, vector<1x128x32xf32>
    %104 = vector.shape_cast %103 : vector<1x128x32xf32> to vector<128x32xf32>
    %cst_73 = arith.constant dense<0.000000e+00> : vector<16x32xf32>
    %105 = tpu.matmul %22, %104, %cst_73 {dimension_numbers = #tpu.dot_dimension_numbers<[1], [0], [0], [1], [0, 0, 1, 1], [], []>} : vector<16x128xf32>, vector<128x32xf32>, vector<16x32xf32> -> vector<16x32xf32>
    %c2_74 = arith.constant 2 : index
    %c0_75 = arith.constant 0 : index
    %c0_76 = arith.constant 0 : index
    %106 = vector.load %arg6[%c2_74, %c0_75, %c0_76] : memref<4x1x32xf32, #tpu.memory_space<vmem>>, vector<1x1x32xf32>
    %107 = vector.shape_cast %106 : vector<1x1x32xf32> to vector<1x32xf32>
    %108 = vector.broadcast %107 : vector<1x32xf32> to vector<16x32xf32>
    %109 = arith.addf %105, %108 : vector<16x32xf32>
    %c2_77 = arith.constant 2 : index
    %c0_78 = arith.constant 0 : index
    %c0_79 = arith.constant 0 : index
    %110 = vector.load %arg7[%c2_77, %c0_78, %c0_79] : memref<4x128x32xf32, #tpu.memory_space<vmem>>, vector<1x128x32xf32>
    %111 = vector.shape_cast %110 : vector<1x128x32xf32> to vector<128x32xf32>
    %cst_80 = arith.constant dense<0.000000e+00> : vector<16x32xf32>
    %112 = tpu.matmul %22, %111, %cst_80 {dimension_numbers = #tpu.dot_dimension_numbers<[1], [0], [0], [1], [0, 0, 1, 1], [], []>} : vector<16x128xf32>, vector<128x32xf32>, vector<16x32xf32> -> vector<16x32xf32>
    %c2_81 = arith.constant 2 : index
    %c0_82 = arith.constant 0 : index
    %c0_83 = arith.constant 0 : index
    %113 = vector.load %arg8[%c2_81, %c0_82, %c0_83] : memref<4x1x32xf32, #tpu.memory_space<vmem>>, vector<1x1x32xf32>
    %114 = vector.shape_cast %113 : vector<1x1x32xf32> to vector<1x32xf32>
    %115 = vector.broadcast %114 : vector<1x32xf32> to vector<16x32xf32>
    %116 = arith.addf %112, %115 : vector<16x32xf32>
    %c2_84 = arith.constant 2 : index
    %c0_85 = arith.constant 0 : index
    %c0_86 = arith.constant 0 : index
    %117 = vector.load %arg9[%c2_84, %c0_85, %c0_86] : memref<4x128x32xf32, #tpu.memory_space<vmem>>, vector<1x128x32xf32>
    %118 = vector.shape_cast %117 : vector<1x128x32xf32> to vector<128x32xf32>
    %cst_87 = arith.constant dense<0.000000e+00> : vector<16x32xf32>
    %119 = tpu.matmul %22, %118, %cst_87 {dimension_numbers = #tpu.dot_dimension_numbers<[1], [0], [0], [1], [0, 0, 1, 1], [], []>} : vector<16x128xf32>, vector<128x32xf32>, vector<16x32xf32> -> vector<16x32xf32>
    %c2_88 = arith.constant 2 : index
    %c0_89 = arith.constant 0 : index
    %c0_90 = arith.constant 0 : index
    %120 = vector.load %arg10[%c2_88, %c0_89, %c0_90] : memref<4x1x32xf32, #tpu.memory_space<vmem>>, vector<1x1x32xf32>
    %121 = vector.shape_cast %120 : vector<1x1x32xf32> to vector<1x32xf32>
    %122 = vector.broadcast %121 : vector<1x32xf32> to vector<16x32xf32>
    %123 = arith.addf %119, %122 : vector<16x32xf32>
    %cst_91 = arith.constant dense<0.000000e+00> : vector<16x16xf32>
    %124 = tpu.matmul %109, %116, %cst_91 {dimension_numbers = #tpu.dot_dimension_numbers<[1], [1], [0], [0], [0, 0, 1, 0], [], []>} : vector<16x32xf32>, vector<16x32xf32>, vector<16x16xf32> -> vector<16x16xf32>
    %cst_92 = arith.constant 0.176776692 : f32
    %125 = vector.broadcast %cst_92 : f32 to vector<16x16xf32>
    %126 = arith.mulf %124, %125 : vector<16x16xf32>
    %127 = arith.addf %126, %23 : vector<16x16xf32>
    %cst_93 = arith.constant dense<0xFF800000> : vector<16xf32>
    %128 = vector.multi_reduction <maximumf>, %127, %cst_93 [1] : vector<16x16xf32> to vector<16xf32>
    %129 = vector.shape_cast %128 : vector<16xf32> to vector<16x1xf32>
    %130 = vector.broadcast %129 : vector<16x1xf32> to vector<16x16xf32>
    %131 = arith.subf %127, %130 : vector<16x16xf32>
    %132 = math.exp %131 : vector<16x16xf32>
    %cst_94 = arith.constant dense<0.000000e+00> : vector<16xf32>
    %133 = vector.multi_reduction <add>, %132, %cst_94 [1] : vector<16x16xf32> to vector<16xf32>
    %134 = vector.shape_cast %133 : vector<16xf32> to vector<16x1xf32>
    %135 = vector.broadcast %134 : vector<16x1xf32> to vector<16x16xf32>
    %136 = arith.divf %132, %135 : vector<16x16xf32>
    %cst_95 = arith.constant dense<0.000000e+00> : vector<16x32xf32>
    %137 = tpu.matmul %136, %123, %cst_95 {dimension_numbers = #tpu.dot_dimension_numbers<[1], [0], [0], [1], [0, 0, 1, 1], [], []>} : vector<16x16xf32>, vector<16x32xf32>, vector<16x32xf32> -> vector<16x32xf32>
    %c2_96 = arith.constant 2 : index
    %c0_97 = arith.constant 0 : index
    %c0_98 = arith.constant 0 : index
    %138 = vector.load %arg11[%c2_96, %c0_97, %c0_98] : memref<4x32x128xf32, #tpu.memory_space<vmem>>, vector<1x32x128xf32>
    %139 = vector.shape_cast %138 : vector<1x32x128xf32> to vector<32x128xf32>
    %cst_99 = arith.constant dense<0.000000e+00> : vector<16x128xf32>
    %140 = tpu.matmul %137, %139, %cst_99 {dimension_numbers = #tpu.dot_dimension_numbers<[1], [0], [0], [1], [0, 0, 1, 1], [], []>} : vector<16x32xf32>, vector<32x128xf32>, vector<16x128xf32> -> vector<16x128xf32>
    %141 = arith.addf %102, %140 : vector<16x128xf32>
    %c3 = arith.constant 3 : index
    %c0_100 = arith.constant 0 : index
    %c0_101 = arith.constant 0 : index
    %142 = vector.load %arg5[%c3, %c0_100, %c0_101] : memref<4x128x32xf32, #tpu.memory_space<vmem>>, vector<1x128x32xf32>
    %143 = vector.shape_cast %142 : vector<1x128x32xf32> to vector<128x32xf32>
    %cst_102 = arith.constant dense<0.000000e+00> : vector<16x32xf32>
    %144 = tpu.matmul %22, %143, %cst_102 {dimension_numbers = #tpu.dot_dimension_numbers<[1], [0], [0], [1], [0, 0, 1, 1], [], []>} : vector<16x128xf32>, vector<128x32xf32>, vector<16x32xf32> -> vector<16x32xf32>
    %c3_103 = arith.constant 3 : index
    %c0_104 = arith.constant 0 : index
    %c0_105 = arith.constant 0 : index
    %145 = vector.load %arg6[%c3_103, %c0_104, %c0_105] : memref<4x1x32xf32, #tpu.memory_space<vmem>>, vector<1x1x32xf32>
    %146 = vector.shape_cast %145 : vector<1x1x32xf32> to vector<1x32xf32>
    %147 = vector.broadcast %146 : vector<1x32xf32> to vector<16x32xf32>
    %148 = arith.addf %144, %147 : vector<16x32xf32>
    %c3_106 = arith.constant 3 : index
    %c0_107 = arith.constant 0 : index
    %c0_108 = arith.constant 0 : index
    %149 = vector.load %arg7[%c3_106, %c0_107, %c0_108] : memref<4x128x32xf32, #tpu.memory_space<vmem>>, vector<1x128x32xf32>
    %150 = vector.shape_cast %149 : vector<1x128x32xf32> to vector<128x32xf32>
    %cst_109 = arith.constant dense<0.000000e+00> : vector<16x32xf32>
    %151 = tpu.matmul %22, %150, %cst_109 {dimension_numbers = #tpu.dot_dimension_numbers<[1], [0], [0], [1], [0, 0, 1, 1], [], []>} : vector<16x128xf32>, vector<128x32xf32>, vector<16x32xf32> -> vector<16x32xf32>
    %c3_110 = arith.constant 3 : index
    %c0_111 = arith.constant 0 : index
    %c0_112 = arith.constant 0 : index
    %152 = vector.load %arg8[%c3_110, %c0_111, %c0_112] : memref<4x1x32xf32, #tpu.memory_space<vmem>>, vector<1x1x32xf32>
    %153 = vector.shape_cast %152 : vector<1x1x32xf32> to vector<1x32xf32>
    %154 = vector.broadcast %153 : vector<1x32xf32> to vector<16x32xf32>
    %155 = arith.addf %151, %154 : vector<16x32xf32>
    %c3_113 = arith.constant 3 : index
    %c0_114 = arith.constant 0 : index
    %c0_115 = arith.constant 0 : index
    %156 = vector.load %arg9[%c3_113, %c0_114, %c0_115] : memref<4x128x32xf32, #tpu.memory_space<vmem>>, vector<1x128x32xf32>
    %157 = vector.shape_cast %156 : vector<1x128x32xf32> to vector<128x32xf32>
    %cst_116 = arith.constant dense<0.000000e+00> : vector<16x32xf32>
    %158 = tpu.matmul %22, %157, %cst_116 {dimension_numbers = #tpu.dot_dimension_numbers<[1], [0], [0], [1], [0, 0, 1, 1], [], []>} : vector<16x128xf32>, vector<128x32xf32>, vector<16x32xf32> -> vector<16x32xf32>
    %c3_117 = arith.constant 3 : index
    %c0_118 = arith.constant 0 : index
    %c0_119 = arith.constant 0 : index
    %159 = vector.load %arg10[%c3_117, %c0_118, %c0_119] : memref<4x1x32xf32, #tpu.memory_space<vmem>>, vector<1x1x32xf32>
    %160 = vector.shape_cast %159 : vector<1x1x32xf32> to vector<1x32xf32>
    %161 = vector.broadcast %160 : vector<1x32xf32> to vector<16x32xf32>
    %162 = arith.addf %158, %161 : vector<16x32xf32>
    %cst_120 = arith.constant dense<0.000000e+00> : vector<16x16xf32>
    %163 = tpu.matmul %148, %155, %cst_120 {dimension_numbers = #tpu.dot_dimension_numbers<[1], [1], [0], [0], [0, 0, 1, 0], [], []>} : vector<16x32xf32>, vector<16x32xf32>, vector<16x16xf32> -> vector<16x16xf32>
    %cst_121 = arith.constant 0.176776692 : f32
    %164 = vector.broadcast %cst_121 : f32 to vector<16x16xf32>
    %165 = arith.mulf %163, %164 : vector<16x16xf32>
    %166 = arith.addf %165, %23 : vector<16x16xf32>
    %cst_122 = arith.constant dense<0xFF800000> : vector<16xf32>
    %167 = vector.multi_reduction <maximumf>, %166, %cst_122 [1] : vector<16x16xf32> to vector<16xf32>
    %168 = vector.shape_cast %167 : vector<16xf32> to vector<16x1xf32>
    %169 = vector.broadcast %168 : vector<16x1xf32> to vector<16x16xf32>
    %170 = arith.subf %166, %169 : vector<16x16xf32>
    %171 = math.exp %170 : vector<16x16xf32>
    %cst_123 = arith.constant dense<0.000000e+00> : vector<16xf32>
    %172 = vector.multi_reduction <add>, %171, %cst_123 [1] : vector<16x16xf32> to vector<16xf32>
    %173 = vector.shape_cast %172 : vector<16xf32> to vector<16x1xf32>
    %174 = vector.broadcast %173 : vector<16x1xf32> to vector<16x16xf32>
    %175 = arith.divf %171, %174 : vector<16x16xf32>
    %cst_124 = arith.constant dense<0.000000e+00> : vector<16x32xf32>
    %176 = tpu.matmul %175, %162, %cst_124 {dimension_numbers = #tpu.dot_dimension_numbers<[1], [0], [0], [1], [0, 0, 1, 1], [], []>} : vector<16x16xf32>, vector<16x32xf32>, vector<16x32xf32> -> vector<16x32xf32>
    %c3_125 = arith.constant 3 : index
    %c0_126 = arith.constant 0 : index
    %c0_127 = arith.constant 0 : index
    %177 = vector.load %arg11[%c3_125, %c0_126, %c0_127] : memref<4x32x128xf32, #tpu.memory_space<vmem>>, vector<1x32x128xf32>
    %178 = vector.shape_cast %177 : vector<1x32x128xf32> to vector<32x128xf32>
    %cst_128 = arith.constant dense<0.000000e+00> : vector<16x128xf32>
    %179 = tpu.matmul %176, %178, %cst_128 {dimension_numbers = #tpu.dot_dimension_numbers<[1], [0], [0], [1], [0, 0, 1, 1], [], []>} : vector<16x32xf32>, vector<32x128xf32>, vector<16x128xf32> -> vector<16x128xf32>
    %180 = arith.addf %141, %179 : vector<16x128xf32>
    %181 = arith.addf %0, %180 : vector<16x128xf32>
    %c0_129 = arith.constant 0 : index
    %c0_130 = arith.constant 0 : index
    %182 = vector.load %arg12[%c0_129, %c0_130] : memref<1x128xf32, #tpu.memory_space<vmem>>, vector<1x128xf32>
    %183 = vector.broadcast %182 : vector<1x128xf32> to vector<16x128xf32>
    %184 = arith.addf %181, %183 : vector<16x128xf32>
    %c0_131 = arith.constant 0 : index
    %c0_132 = arith.constant 0 : index
    %185 = vector.load %arg13[%c0_131, %c0_132] : memref<1x128xf32, #tpu.memory_space<vmem>>, vector<1x128xf32>
    %c0_133 = arith.constant 0 : index
    %c0_134 = arith.constant 0 : index
    %186 = vector.load %arg14[%c0_133, %c0_134] : memref<1x128xf32, #tpu.memory_space<vmem>>, vector<1x128xf32>
    %cst_135 = arith.constant dense<0.000000e+00> : vector<16xf32>
    %187 = vector.multi_reduction <add>, %184, %cst_135 [1] : vector<16x128xf32> to vector<16xf32>
    %188 = vector.shape_cast %187 : vector<16xf32> to vector<16x1xf32>
    %cst_136 = arith.constant 1.280000e+02 : f32
    %189 = vector.broadcast %cst_136 : f32 to vector<16x1xf32>
    %190 = arith.divf %188, %189 : vector<16x1xf32>
    %191 = vector.broadcast %190 : vector<16x1xf32> to vector<16x128xf32>
    %192 = arith.subf %184, %191 : vector<16x128xf32>
    %193 = arith.mulf %192, %192 : vector<16x128xf32>
    %cst_137 = arith.constant dense<0.000000e+00> : vector<16xf32>
    %194 = vector.multi_reduction <add>, %193, %cst_137 [1] : vector<16x128xf32> to vector<16xf32>
    %195 = vector.shape_cast %194 : vector<16xf32> to vector<16x1xf32>
    %cst_138 = arith.constant 1.280000e+02 : f32
    %196 = vector.broadcast %cst_138 : f32 to vector<16x1xf32>
    %197 = arith.divf %195, %196 : vector<16x1xf32>
    %cst_139 = arith.constant 9.99999974E-6 : f32
    %198 = vector.broadcast %cst_139 : f32 to vector<16x1xf32>
    %199 = arith.addf %197, %198 : vector<16x1xf32>
    %200 = math.rsqrt %199 : vector<16x1xf32>
    %201 = vector.broadcast %200 : vector<16x1xf32> to vector<16x128xf32>
    %202 = arith.mulf %192, %201 : vector<16x128xf32>
    %203 = vector.broadcast %185 : vector<1x128xf32> to vector<16x128xf32>
    %204 = arith.mulf %202, %203 : vector<16x128xf32>
    %205 = vector.broadcast %186 : vector<1x128xf32> to vector<16x128xf32>
    %206 = arith.addf %204, %205 : vector<16x128xf32>
    %c0_140 = arith.constant 0 : index
    %c0_141 = arith.constant 0 : index
    %207 = vector.load %arg15[%c0_140, %c0_141] : memref<128x512xf32, #tpu.memory_space<vmem>>, vector<128x512xf32>
    %cst_142 = arith.constant dense<0.000000e+00> : vector<16x512xf32>
    %208 = tpu.matmul %206, %207, %cst_142 {dimension_numbers = #tpu.dot_dimension_numbers<[1], [0], [0], [1], [0, 0, 1, 1], [], []>} : vector<16x128xf32>, vector<128x512xf32>, vector<16x512xf32> -> vector<16x512xf32>
    %c0_143 = arith.constant 0 : index
    %c0_144 = arith.constant 0 : index
    %209 = vector.load %arg16[%c0_143, %c0_144] : memref<1x512xf32, #tpu.memory_space<vmem>>, vector<1x512xf32>
    %210 = vector.broadcast %209 : vector<1x512xf32> to vector<16x512xf32>
    %211 = arith.addf %208, %210 : vector<16x512xf32>
    %cst_145 = arith.constant 5.000000e-01 : f32
    %212 = vector.broadcast %cst_145 : f32 to vector<16x512xf32>
    %213 = arith.mulf %212, %211 : vector<16x512xf32>
    %cst_146 = arith.constant 4.471500e-02 : f32
    %214 = vector.broadcast %cst_146 : f32 to vector<16x512xf32>
    %215 = arith.mulf %214, %211 : vector<16x512xf32>
    %216 = arith.mulf %215, %211 : vector<16x512xf32>
    %217 = arith.mulf %216, %211 : vector<16x512xf32>
    %218 = arith.addf %211, %217 : vector<16x512xf32>
    %cst_147 = arith.constant 0.797884583 : f32
    %219 = vector.broadcast %cst_147 : f32 to vector<16x512xf32>
    %220 = arith.mulf %219, %218 : vector<16x512xf32>
    %221 = math.tanh %220 : vector<16x512xf32>
    %cst_148 = arith.constant 1.000000e+00 : f32
    %222 = vector.broadcast %cst_148 : f32 to vector<16x512xf32>
    %223 = arith.addf %222, %221 : vector<16x512xf32>
    %224 = arith.mulf %213, %223 : vector<16x512xf32>
    %c0_149 = arith.constant 0 : index
    %c0_150 = arith.constant 0 : index
    %225 = vector.load %arg17[%c0_149, %c0_150] : memref<512x128xf32, #tpu.memory_space<vmem>>, vector<512x128xf32>
    %cst_151 = arith.constant dense<0.000000e+00> : vector<16x128xf32>
    %226 = tpu.matmul %224, %225, %cst_151 {dimension_numbers = #tpu.dot_dimension_numbers<[1], [0], [0], [1], [0, 0, 1, 1], [], []>} : vector<16x512xf32>, vector<512x128xf32>, vector<16x128xf32> -> vector<16x128xf32>
    %c0_152 = arith.constant 0 : index
    %c0_153 = arith.constant 0 : index
    %227 = vector.load %arg18[%c0_152, %c0_153] : memref<1x128xf32, #tpu.memory_space<vmem>>, vector<1x128xf32>
    %228 = vector.broadcast %227 : vector<1x128xf32> to vector<16x128xf32>
    %229 = arith.addf %226, %228 : vector<16x128xf32>
    %230 = arith.addf %184, %229 : vector<16x128xf32>
    %c0_154 = arith.constant 0 : index
    %c0_155 = arith.constant 0 : index
    %231 = vector.load %arg19[%c0_154, %c0_155] : memref<16x128xf32, #tpu.memory_space<vmem>>, vector<16x128xf32>
    tpu.vector_store %arg19[%c0_154, %c0_155], %230 {strides = array<i32>} : memref<16x128xf32, #tpu.memory_space<vmem>>, vector<16x128xf32>,
    return
  }
  func.func @transform_0(%arg0: i32) -> (i32, i32) {
    %c0_i32 = arith.constant 0 : i32
    %c0_i32_0 = arith.constant 0 : i32
    %c0_i32_1 = arith.constant 0 : i32
    return %c0_i32, %c0_i32_0 : i32, i32
  }
  func.func @transform_1(%arg0: i32) -> (i32, i32) {
    %c0_i32 = arith.constant 0 : i32
    %c0_i32_0 = arith.constant 0 : i32
    %c0_i32_1 = arith.constant 0 : i32
    return %c0_i32, %c0_i32_0 : i32, i32
  }
  func.func @transform_2(%arg0: i32) -> (i32, i32) {
    %c0_i32 = arith.constant 0 : i32
    %c0_i32_0 = arith.constant 0 : i32
    %c0_i32_1 = arith.constant 0 : i32
    return %c0_i32, %c0_i32_0 : i32, i32
  }
  func.func @transform_3(%arg0: i32) -> (i32, i32) {
    %c0_i32 = arith.constant 0 : i32
    %c0_i32_0 = arith.constant 0 : i32
    %c0_i32_1 = arith.constant 0 : i32
    return %c0_i32, %c0_i32_0 : i32, i32
  }
  func.func @transform_4(%arg0: i32) -> (i32, i32, i32) {
    %c0_i32 = arith.constant 0 : i32
    %c0_i32_0 = arith.constant 0 : i32
    %c0_i32_1 = arith.constant 0 : i32
    %c0_i32_2 = arith.constant 0 : i32
    return %c0_i32, %c0_i32_0, %c0_i32_1 : i32, i32, i32
  }
  func.func @transform_5(%arg0: i32) -> (i32, i32, i32) {
    %c0_i32 = arith.constant 0 : i32
    %c0_i32_0 = arith.constant 0 : i32
    %c0_i32_1 = arith.constant 0 : i32
    %c0_i32_2 = arith.constant 0 : i32
    return %c0_i32, %c0_i32_0, %c0_i32_1 : i32, i32, i32
  }
  func.func @transform_6(%arg0: i32) -> (i32, i32, i32) {
    %c0_i32 = arith.constant 0 : i32
    %c0_i32_0 = arith.constant 0 : i32
    %c0_i32_1 = arith.constant 0 : i32
    %c0_i32_2 = arith.constant 0 : i32
    return %c0_i32, %c0_i32_0, %c0_i32_1 : i32, i32, i32
  }
  func.func @transform_7(%arg0: i32) -> (i32, i32, i32) {
    %c0_i32 = arith.constant 0 : i32
    %c0_i32_0 = arith.constant 0 : i32
    %c0_i32_1 = arith.constant 0 : i32
    %c0_i32_2 = arith.constant 0 : i32
    return %c0_i32, %c0_i32_0, %c0_i32_1 : i32, i32, i32
  }
  func.func @transform_8(%arg0: i32) -> (i32, i32, i32) {
    %c0_i32 = arith.constant 0 : i32
    %c0_i32_0 = arith.constant 0 : i32
    %c0_i32_1 = arith.constant 0 : i32
    %c0_i32_2 = arith.constant 0 : i32
    return %c0_i32, %c0_i32_0, %c0_i32_1 : i32, i32, i32
  }
  func.func @transform_9(%arg0: i32) -> (i32, i32, i32) {
    %c0_i32 = arith.constant 0 : i32
    %c0_i32_0 = arith.constant 0 : i32
    %c0_i32_1 = arith.constant 0 : i32
    %c0_i32_2 = arith.constant 0 : i32
    return %c0_i32, %c0_i32_0, %c0_i32_1 : i32, i32, i32
  }
  func.func @transform_10(%arg0: i32) -> (i32, i32, i32) {
    %c0_i32 = arith.constant 0 : i32
    %c0_i32_0 = arith.constant 0 : i32
    %c0_i32_1 = arith.constant 0 : i32
    %c0_i32_2 = arith.constant 0 : i32
    return %c0_i32, %c0_i32_0, %c0_i32_1 : i32, i32, i32
  }
  func.func @transform_11(%arg0: i32) -> (i32, i32) {
    %c0_i32 = arith.constant 0 : i32
    %c0_i32_0 = arith.constant 0 : i32
    %c0_i32_1 = arith.constant 0 : i32
    return %c0_i32, %c0_i32_0 : i32, i32
  }
  func.func @transform_12(%arg0: i32) -> (i32, i32) {
    %c0_i32 = arith.constant 0 : i32
    %c0_i32_0 = arith.constant 0 : i32
    %c0_i32_1 = arith.constant 0 : i32
    return %c0_i32, %c0_i32_0 : i32, i32
  }
  func.func @transform_13(%arg0: i32) -> (i32, i32) {
    %c0_i32 = arith.constant 0 : i32
    %c0_i32_0 = arith.constant 0 : i32
    %c0_i32_1 = arith.constant 0 : i32
    return %c0_i32, %c0_i32_0 : i32, i32
  }
  func.func @transform_14(%arg0: i32) -> (i32, i32) {
    %c0_i32 = arith.constant 0 : i32
    %c0_i32_0 = arith.constant 0 : i32
    %c0_i32_1 = arith.constant 0 : i32
    return %c0_i32, %c0_i32_0 : i32, i32
  }
  func.func @transform_15(%arg0: i32) -> (i32, i32) {
    %c0_i32 = arith.constant 0 : i32
    %c0_i32_0 = arith.constant 0 : i32
    %c0_i32_1 = arith.constant 0 : i32
    return %c0_i32, %c0_i32_0 : i32, i32
  }
  func.func @transform_16(%arg0: i32) -> (i32, i32) {
    %c0_i32 = arith.constant 0 : i32
    %c0_i32_0 = arith.constant 0 : i32
    %c0_i32_1 = arith.constant 0 : i32
    return %c0_i32, %c0_i32_0 : i32, i32
  }
  func.func @transform_17(%arg0: i32) -> (i32, i32) {
    %c0_i32 = arith.constant 0 : i32
    %c0_i32_0 = arith.constant 0 : i32
    %c0_i32_1 = arith.constant 0 : i32
    return %c0_i32, %c0_i32_0 : i32, i32
  }
  func.func @transform_18(%arg0: i32) -> (i32, i32) {
    %c0_i32 = arith.constant 0 : i32
    %c0_i32_0 = arith.constant 0 : i32
    %c0_i32_1 = arith.constant 0 : i32
    return %c0_i32, %c0_i32_0 : i32, i32
  }
}

</mosaic_0001>

<llo_original>
// kernel: block_forward.1
$region0: #{block_forward.1}
  #allocation0 [shape = 'u32[]', space=smem, size = 0x4, offset = 0x4, fixed_abs, tag = 'smem constant byte address 0x4 - core index']
  #allocation1 [shape = 'u32[72,128]{1,0:T(1,128)}', space=vmem, size = 0x9000, scoped, tag = 'internal scratch']
  %s0 = inlined_call_operand.vmem [shape: f32[16,128], index: 0, kind: input, shape index: {}]
  %s1 = inlined_call_operand.vmem [shape: f32[16,16], index: 1, kind: input, shape index: {}]
  %s2 = inlined_call_operand.vmem [shape: f32[1,128], index: 2, kind: input, shape index: {}]
  %s3 = inlined_call_operand.vmem [shape: f32[1,128], index: 3, kind: input, shape index: {}]
  %s4 = inlined_call_operand.vmem [shape: f32[4,128,32], index: 4, kind: input, shape index: {}]
  %s5 = inlined_call_operand.vmem [shape: f32[4,1,32], index: 5, kind: input, shape index: {}]
  %s6 = inlined_call_operand.vmem [shape: f32[4,128,32], index: 6, kind: input, shape index: {}]
  %s7 = inlined_call_operand.vmem [shape: f32[4,1,32], index: 7, kind: input, shape index: {}]
  %s8 = inlined_call_operand.vmem [shape: f32[4,128,32], index: 8, kind: input, shape index: {}]
  %s9 = inlined_call_operand.vmem [shape: f32[4,1,32], index: 9, kind: input, shape index: {}]
  %s10 = inlined_call_operand.vmem [shape: f32[4,32,128], index: 10, kind: input, shape index: {}]
  %s11 = inlined_call_operand.vmem [shape: f32[1,128], index: 11, kind: input, shape index: {}]
  %s12 = inlined_call_operand.vmem [shape: f32[1,128], index: 12, kind: input, shape index: {}]
  %s13 = inlined_call_operand.vmem [shape: f32[1,128], index: 13, kind: input, shape index: {}]
  %s14 = inlined_call_operand.vmem [shape: f32[128,512], index: 14, kind: input, shape index: {}]
  %s15 = inlined_call_operand.vmem [shape: f32[1,512], index: 15, kind: input, shape index: {}]
  %s16 = inlined_call_operand.vmem [shape: f32[512,128], index: 16, kind: input, shape index: {}]
  %s17 = inlined_call_operand.vmem [shape: f32[1,128], index: 17, kind: input, shape index: {}]
  %s18 = inlined_call_operand.hbm [shape: f32[16,128], index: 18, kind: output, shape index: {}]
  %s19 = sld [smem:[#allocation0]]
  $region82: #{block_forward.1} parent=0
    _
  %s21 = ssub.s32 1, %s19
  %s22 = scalar_select 0, %s21, %s19
  $region1: #{block_forward.1} parent=0
    #allocation2 [shape = 'u8[8192]{0}', space=vmem, size = 0x2000, scoped, tag = 'output window, operand 0, single buffered']
    #allocation3 [shape = 's32[1]{0}', space=sflag, size = 0x4, scoped, tag = 'scoped memory for block_forward.1']
    %23 = vsyncpa [#allocation3], 0
    // Predicated region
    $region2: #{block_forward.1} parent=1 // pred_check
      _
    $region3: #{block_forward.1} parent=1 // pred_check_branch
      %25 = sbr.rel (0) target = $region5
    $region4: #{block_forward.1} parent=1 // pred_region
      _
    $region5: #{block_forward.1} parent=1 // pred_fallthru
      _
    // Predicated region
    $region6: #{block_forward.1} parent=1 // pred_check
      _
    $region7: #{block_forward.1} parent=1 // pred_check_branch
      %27 = sbr.rel (0) target = $region9
    $region8: #{block_forward.1} parent=1 // pred_region
      _
    $region9: #{block_forward.1} parent=1 // pred_fallthru
      _
    // Predicated region
    $region10: #{block_forward.1} parent=1 // pred_check
      _
    $region11: #{block_forward.1} parent=1 // pred_check_branch
      %29 = sbr.rel (0) target = $region13
    $region12: #{block_forward.1} parent=1 // pred_region
      _
    $region13: #{block_forward.1} parent=1 // pred_fallthru
      _
    // Predicated region
    $region14: #{block_forward.1} parent=1 // pred_check
      _
    $region15: #{block_forward.1} parent=1 // pred_check_branch
      %31 = sbr.rel (0) target = $region17
    $region16: #{block_forward.1} parent=1 // pred_region
      _
    $region17: #{block_forward.1} parent=1 // pred_fallthru
      _
    // Predicated region
    $region18: #{block_forward.1} parent=1 // pred_check
      _
    $region19: #{block_forward.1} parent=1 // pred_check_branch
      %33 = sbr.rel (0) target = $region21
    $region20: #{block_forward.1} parent=1 // pred_region
      _
    $region21: #{block_forward.1} parent=1 // pred_fallthru
      _
    // Predicated region
    $region22: #{block_forward.1} parent=1 // pred_check
      _
    $region23: #{block_forward.1} parent=1 // pred_check_branch
      %35 = sbr.rel (0) target = $region25
    $region24: #{block_forward.1} parent=1 // pred_region
      _
    $region25: #{block_forward.1} parent=1 // pred_fallthru
      _
    // Predicated region
    $region26: #{block_forward.1} parent=1 // pred_check
      _
    $region27: #{block_forward.1} parent=1 // pred_check_branch
      %37 = sbr.rel (0) target = $region29
    $region28: #{block_forward.1} parent=1 // pred_region
      _
    $region29: #{block_forward.1} parent=1 // pred_fallthru
      _
    // Predicated region
    $region30: #{block_forward.1} parent=1 // pred_check
      _
    $region31: #{block_forward.1} parent=1 // pred_check_branch
      %39 = sbr.rel (0) target = $region33
    $region32: #{block_forward.1} parent=1 // pred_region
      _
    $region33: #{block_forward.1} parent=1 // pred_fallthru
      _
    // Predicated region
    $region34: #{block_forward.1} parent=1 // pred_check
      _
    $region35: #{block_forward.1} parent=1 // pred_check_branch
      %41 = sbr.rel (0) target = $region37
    $region36: #{block_forward.1} parent=1 // pred_region
      _
    $region37: #{block_forward.1} parent=1 // pred_fallthru
      _
    // Predicated region
    $region38: #{block_forward.1} parent=1 // pred_check
      _
    $region39: #{block_forward.1} parent=1 // pred_check_branch
      %43 = sbr.rel (0) target = $region41
    $region40: #{block_forward.1} parent=1 // pred_region
      _
    $region41: #{block_forward.1} parent=1 // pred_fallthru
      _
    // Predicated region
    $region42: #{block_forward.1} parent=1 // pred_check
      _
    $region43: #{block_forward.1} parent=1 // pred_check_branch
      %45 = sbr.rel (0) target = $region45
    $region44: #{block_forward.1} parent=1 // pred_region
      _
    $region45: #{block_forward.1} parent=1 // pred_fallthru
      _
    // Predicated region
    $region46: #{block_forward.1} parent=1 // pred_check
      _
    $region47: #{block_forward.1} parent=1 // pred_check_branch
      %47 = sbr.rel (0) target = $region49
    $region48: #{block_forward.1} parent=1 // pred_region
      _
    $region49: #{block_forward.1} parent=1 // pred_fallthru
      _
    // Predicated region
    $region50: #{block_forward.1} parent=1 // pred_check
      _
    $region51: #{block_forward.1} parent=1 // pred_check_branch
      %49 = sbr.rel (0) target = $region53
    $region52: #{block_forward.1} parent=1 // pred_region
      _
    $region53: #{block_forward.1} parent=1 // pred_fallthru
      _
    // Predicated region
    $region54: #{block_forward.1} parent=1 // pred_check
      _
    $region55: #{block_forward.1} parent=1 // pred_check_branch
      %51 = sbr.rel (0) target = $region57
    $region56: #{block_forward.1} parent=1 // pred_region
      _
    $region57: #{block_forward.1} parent=1 // pred_fallthru
      _
    // Predicated region
    $region58: #{block_forward.1} parent=1 // pred_check
      _
    $region59: #{block_forward.1} parent=1 // pred_check_branch
      %53 = sbr.rel (0) target = $region61
    $region60: #{block_forward.1} parent=1 // pred_region
      _
    $region61: #{block_forward.1} parent=1 // pred_fallthru
      _
    // Predicated region
    $region62: #{block_forward.1} parent=1 // pred_check
      _
    $region63: #{block_forward.1} parent=1 // pred_check_branch
      %55 = sbr.rel (0) target = $region65
    $region64: #{block_forward.1} parent=1 // pred_region
      _
    $region65: #{block_forward.1} parent=1 // pred_fallthru
      _
    // Predicated region
    $region66: #{block_forward.1} parent=1 // pred_check
      _
    $region67: #{block_forward.1} parent=1 // pred_check_branch
      %57 = sbr.rel (0) target = $region69
    $region68: #{block_forward.1} parent=1 // pred_region
      _
    $region69: #{block_forward.1} parent=1 // pred_fallthru
      _
    // Predicated region
    $region70: #{block_forward.1} parent=1 // pred_check
      _
    $region71: #{block_forward.1} parent=1 // pred_check_branch
      %59 = sbr.rel (0) target = $region73
    $region72: #{block_forward.1} parent=1 // pred_region
      _
    $region73: #{block_forward.1} parent=1 // pred_fallthru
      _
    %v60 = vld [vmem:[%s0] sm:$0xff]
    %v61 = vld [vmem:[%s0 + $0x8] sm:$0xff]
    %v62 = vld [vmem:[%s2] sm:$0x1]
    %v63 = vld [vmem:[%s3] sm:$0x1]
    %64 = vadd.xlane.f32.xlu0 %v60
    %v65 = vpop.xlane.xlu0 %64
    %66 = vadd.xlane.f32.xlu0 %v61
    %v67 = vpop.xlane.xlu0 %66
    %v68 = vrcp.pop 128.0
    %v69 = vmul.f32 128.0, %v68
    %v70 = vsub.f32 1.0, %v69
    %v71 = vmul.f32 %v68, %v70
    %v72 = vadd.f32 %v68, %v71
    %vm73 = vweird.f32 %v68
    %v74 = vsel %vm73, %v68, %v72
    %v75 = vmul.f32 %v65, %v74
    %v76 = vmul.f32 %v67, %v74
    %v77 = vsub.f32 %v60, %v75
    %v78 = vsub.f32 %v61, %v76
    %v79 = vmul.f32 %v77, %v77
    %v80 = vmul.f32 %v78, %v78
    %81 = vadd.xlane.f32.xlu0 %v79
    %v82 = vpop.xlane.xlu0 %81
    %83 = vadd.xlane.f32.xlu0 %v80
    %v84 = vpop.xlane.xlu0 %83
    %v85 = vmul.f32 %v82, %v74
    %v86 = vmul.f32 %v84, %v74
    %v87 = vadd.f32 %v85, 1e-05
    %v88 = vadd.f32 %v86, 1e-05
    %v89 = vrsqrt.pop %v87
    %v90 = vmul.f32 %v89, %v87
    %v91 = vmul.f32 %v90, %v89
    %v92 = vmul.f32 0.5, %v91
    %v93 = vsub.f32 1.5, %v92
    %v94 = vmul.f32 %v89, %v93
    %vm95 = vweird.f32 %v87
    %vm96 = vweird.f32 %v89
    %vm97 = vmor %vm95, %vm96
    %v98 = vsel %vm97, %v89, %v94
    %v99 = vrsqrt.pop %v88
    %v100 = vmul.f32 %v99, %v88
    %v101 = vmul.f32 %v100, %v99
    %v102 = vmul.f32 0.5, %v101
    %v103 = vsub.f32 1.5, %v102
    %v104 = vmul.f32 %v99, %v103
    %vm105 = vweird.f32 %v88
    %vm106 = vweird.f32 %v99
    %vm107 = vmor %vm105, %vm106
    %v108 = vsel %vm107, %v99, %v104
    %v109 = vmul.f32 %v77, %v98
    %v110 = vmul.f32 %v78, %v108
    %v112 = vperm.slane %v62, 0
    %v114 = vmul.f32 %v109, %v112
    %v115 = vmul.f32 %v110, %v112
    %v117 = vperm.slane %v63, 0
    %v119 = vadd.f32 %v114, %v117
    %v120 = vadd.f32 %v115, %v117
    %v121 = vld [vmem:[%s1] sm:$0xff]
    %v122 = vld [vmem:[%s1 + $0x8] sm:$0xff]
    %v123 = vld [vmem:[%s4] sm:$0xff]
    %v124 = vld [vmem:[%s4 + $0x8] sm:$0xff]
    %v125 = vld [vmem:[%s4 + $0x10] sm:$0xff]
    %v126 = vld [vmem:[%s4 + $0x18] sm:$0xff]
    %v127 = vld [vmem:[%s4 + $0x20] sm:$0xff]
    %v128 = vld [vmem:[%s4 + $0x28] sm:$0xff]
    %v129 = vld [vmem:[%s4 + $0x30] sm:$0xff]
    %v130 = vld [vmem:[%s4 + $0x38] sm:$0xff]
    %v131 = vld [vmem:[%s4 + $0x40] sm:$0xff]
    %v132 = vld [vmem:[%s4 + $0x48] sm:$0xff]
    %v133 = vld [vmem:[%s4 + $0x50] sm:$0xff]
    %v134 = vld [vmem:[%s4 + $0x58] sm:$0xff]
    %v135 = vld [vmem:[%s4 + $0x60] sm:$0xff]
    %v136 = vld [vmem:[%s4 + $0x68] sm:$0xff]
    %v137 = vld [vmem:[%s4 + $0x70] sm:$0xff]
    %v138 = vld [vmem:[%s4 + $0x78] sm:$0xff]
    %v139 = vld [vmem:[%s5] sm:$0x1]
    %v141 = vperm.slane %v139, 0
    %143 = vmatpush.msra.mxu0 %v138
    %144 = vmatpush.msra.mxu0 %v137
    %145 = vmatpush.msra.mxu0 %v136
    %146 = vmatpush.msra.mxu0 %v135
    %147 = vmatpush.msra.mxu0 %v134
    %148 = vmatpush.msra.mxu0 %v133
    %149 = vmatpush.msra.mxu0 %v132
    %150 = vmatpush.msra.mxu0 %v131
    %151 = vmatpush.msra.mxu0 %v130
    %152 = vmatpush.msra.mxu0 %v129
    %153 = vmatpush.msra.mxu0 %v128
    %154 = vmatpush.msra.mxu0 %v127
    %155 = vmatpush.msra.mxu0 %v126
    %156 = vmatpush.msra.mxu0 %v125
    %157 = vmatpush.msra.mxu0 %v124
    %158 = vmatpush.msra.mxu0 %v123
    %159 = vmatmul.f32.gmra.mxu0 %v119
    %v160 = vpop.f32.mrf.mxu0
    %v161 = vadd.f32 %v141, %v160
    %162 = vmatmul.f32.gmra.mxu0 %v120
    %v163 = vpop.f32.mrf.mxu0
    %v164 = vadd.f32 %v141, %v163
    %165 = vdwg.mxu0
    %v166 = vld [vmem:[%s6] sm:$0xff]
    %v167 = vld [vmem:[%s6 + $0x8] sm:$0xff]
    %v168 = vld [vmem:[%s6 + $0x10] sm:$0xff]
    %v169 = vld [vmem:[%s6 + $0x18] sm:$0xff]
    %v170 = vld [vmem:[%s6 + $0x20] sm:$0xff]
    %v171 = vld [vmem:[%s6 + $0x28] sm:$0xff]
    %v172 = vld [vmem:[%s6 + $0x30] sm:$0xff]
    %v173 = vld [vmem:[%s6 + $0x38] sm:$0xff]
    %v174 = vld [vmem:[%s6 + $0x40] sm:$0xff]
    %v175 = vld [vmem:[%s6 + $0x48] sm:$0xff]
    %v176 = vld [vmem:[%s6 + $0x50] sm:$0xff]
    %v177 = vld [vmem:[%s6 + $0x58] sm:$0xff]
    %v178 = vld [vmem:[%s6 + $0x60] sm:$0xff]
    %v179 = vld [vmem:[%s6 + $0x68] sm:$0xff]
    %v180 = vld [vmem:[%s6 + $0x70] sm:$0xff]
    %v181 = vld [vmem:[%s6 + $0x78] sm:$0xff]
    %v182 = vld [vmem:[%s7] sm:$0x1]
    %v184 = vperm.slane %v182, 0
    %186 = vmatpush.msra.mxu0 %v181
    %187 = vmatpush.msra.mxu0 %v180
    %188 = vmatpush.msra.mxu0 %v179
    %189 = vmatpush.msra.mxu0 %v178
    %190 = vmatpush.msra.mxu0 %v177
    %191 = vmatpush.msra.mxu0 %v176
    %192 = vmatpush.msra.mxu0 %v175
    %193 = vmatpush.msra.mxu0 %v174
    %194 = vmatpush.msra.mxu0 %v173
    %195 = vmatpush.msra.mxu0 %v172
    %196 = vmatpush.msra.mxu0 %v171
    %197 = vmatpush.msra.mxu0 %v170
    %198 = vmatpush.msra.mxu0 %v169
    %199 = vmatpush.msra.mxu0 %v168
    %200 = vmatpush.msra.mxu0 %v167
    %201 = vmatpush.msra.mxu0 %v166
    %202 = vmatmul.f32.gmra.mxu0 %v119
    %v203 = vpop.f32.mrf.mxu0
    %v204 = vadd.f32 %v184, %v203
    %205 = vmatmul.f32.gmra.mxu0 %v120
    %v206 = vpop.f32.mrf.mxu0
    %v207 = vadd.f32 %v184, %v206
    %208 = vdwg.mxu0
    %v209 = vld [vmem:[%s8] sm:$0xff]
    %v210 = vld [vmem:[%s8 + $0x8] sm:$0xff]
    %v211 = vld [vmem:[%s8 + $0x10] sm:$0xff]
    %v212 = vld [vmem:[%s8 + $0x18] sm:$0xff]
    %v213 = vld [vmem:[%s8 + $0x20] sm:$0xff]
    %v214 = vld [vmem:[%s8 + $0x28] sm:$0xff]
    %v215 = vld [vmem:[%s8 + $0x30] sm:$0xff]
    %v216 = vld [vmem:[%s8 + $0x38] sm:$0xff]
    %v217 = vld [vmem:[%s8 + $0x40] sm:$0xff]
    %v218 = vld [vmem:[%s8 + $0x48] sm:$0xff]
    %v219 = vld [vmem:[%s8 + $0x50] sm:$0xff]
    %v220 = vld [vmem:[%s8 + $0x58] sm:$0xff]
    %v221 = vld [vmem:[%s8 + $0x60] sm:$0xff]
    %v222 = vld [vmem:[%s8 + $0x68] sm:$0xff]
    %v223 = vld [vmem:[%s8 + $0x70] sm:$0xff]
    %v224 = vld [vmem:[%s8 + $0x78] sm:$0xff]
    %v225 = vld [vmem:[%s9] sm:$0x1]
    %v227 = vperm.slane %v225, 0
    %229 = vmatpush.msra.mxu0 %v224
    %230 = vmatpush.msra.mxu0 %v223
    %231 = vmatpush.msra.mxu0 %v222
    %232 = vmatpush.msra.mxu0 %v221
    %233 = vmatpush.msra.mxu0 %v220
    %234 = vmatpush.msra.mxu0 %v219
    %235 = vmatpush.msra.mxu0 %v218
    %236 = vmatpush.msra.mxu0 %v217
    %237 = vmatpush.msra.mxu0 %v216
    %238 = vmatpush.msra.mxu0 %v215
    %239 = vmatpush.msra.mxu0 %v214
    %240 = vmatpush.msra.mxu0 %v213
    %241 = vmatpush.msra.mxu0 %v212
    %242 = vmatpush.msra.mxu0 %v211
    %243 = vmatpush.msra.mxu0 %v210
    %244 = vmatpush.msra.mxu0 %v209
    %245 = vmatmul.f32.gmra.mxu0 %v119
    %v246 = vpop.f32.mrf.mxu0
    %v247 = vadd.f32 %v227, %v246
    %248 = vmatmul.f32.gmra.mxu0 %v120
    %v249 = vpop.f32.mrf.mxu0
    %v250 = vadd.f32 %v227, %v249
    %251 = vdwg.mxu0
    %vm252 = vcmask 261120
    %v254 = vsel %vm252, %v161, 0
    %v257 = vsel %vm252, %v164, 0
    %v260 = vsel %vm252, %v204, 0
    %v263 = vsel %vm252, %v207, 0
    %265 = vmatpush.xpose.msra.mxu0 0.0
    %266 = vmatpush.xpose.msra.mxu0 0.0
    %267 = vmatpush.xpose.msra.mxu0 0.0
    %268 = vmatpush.xpose.msra.mxu0 0.0
    %269 = vmatpush.xpose.msra.mxu0 0.0
    %270 = vmatpush.xpose.msra.mxu0 0.0
    %271 = vmatpush.xpose.msra.mxu0 0.0
    %272 = vmatpush.xpose.msra.mxu0 0.0
    %273 = vmatpush.xpose.msra.mxu0 0.0
    %274 = vmatpush.xpose.msra.mxu0 0.0
    %275 = vmatpush.xpose.msra.mxu0 0.0
    %276 = vmatpush.xpose.msra.mxu0 0.0
    %277 = vmatpush.xpose.msra.mxu0 0.0
    %278 = vmatpush.xpose.msra.mxu0 0.0
    %279 = vmatpush.xpose.msra.mxu0 %v263
    %280 = vmatpush.xpose.msra.mxu0 %v260
    %281 = vmatmul.f32.gmra.mxu0 %v254
    %v282 = vpop.f32.mrf.mxu0
    %v283 = vadd.f32 0.0, %v282
    %284 = vmatmul.f32.gmra.mxu0 %v257
    %v285 = vpop.f32.mrf.mxu0
    %v286 = vadd.f32 0.0, %v285
    %287 = vdwg.mxu0
    %v288 = vmul.f32 %v283, 0.17677669
    %v289 = vmul.f32 %v286, 0.17677669
    %v290 = vadd.f32 %v288, %v121
    %v291 = vadd.f32 %v289, %v122
    %vm292 = vcmask 130048
    %v293 = vsel %vm292, %v290, -inf
    %294 = vmax.xlane.f32.xlu0 %v293
    %v295 = vpop.xlane.xlu0 %294
    %v296 = vsel %vm292, %v291, -inf
    %297 = vmax.xlane.f32.xlu0 %v296
    %v298 = vpop.xlane.xlu0 %297
    %v299 = vsub.f32 %v290, %v295
    %v300 = vsub.f32 %v291, %v298
    %v301 = vmul.f32 %v299, 1.442695
    %v302 = vpow.pop %v301
    %v303 = vmul.f32 %v300, 1.442695
    %v304 = vpow.pop %v303
    %v305 = vsel %vm292, %v302, 0.0
    %306 = vadd.xlane.f32.xlu0 %v305
    %v307 = vpop.xlane.xlu0 %306
    %v308 = vsel %vm292, %v304, 0.0
    %309 = vadd.xlane.f32.xlu0 %v308
    %v310 = vpop.xlane.xlu0 %309
    %v311 = vrcp.pop %v307
    %v312 = vmul.f32 %v307, %v311
    %v313 = vsub.f32 1.0, %v312
    %v314 = vmul.f32 %v311, %v313
    %v315 = vadd.f32 %v311, %v314
    %vm316 = vweird.f32 %v307
    %vm317 = vweird.f32 %v311
    %vm318 = vmor %vm316, %vm317
    %v319 = vsel %vm318, %v311, %v315
    %v320 = vand.u32 2147483647, %v307
    %vm321 = vcmp.eq.f32.partialorder %v320, 8.507059e+37
    %v322 = vand.u32 %v307, 2147483648
    %v323 = vor.u32 1.1754944e-38, %v322
    %v324 = vsel %vm321, %v323, %v319
    %v325 = vmul.f32 %v302, %v324
    %v326 = vrcp.pop %v310
    %v327 = vmul.f32 %v310, %v326
    %v328 = vsub.f32 1.0, %v327
    %v329 = vmul.f32 %v326, %v328
    %v330 = vadd.f32 %v326, %v329
    %vm331 = vweird.f32 %v310
    %vm332 = vweird.f32 %v326
    %vm333 = vmor %vm331, %vm332
    %v334 = vsel %vm333, %v326, %v330
    %v335 = vand.u32 2147483647, %v310
    %vm336 = vcmp.eq.f32.partialorder %v335, 8.507059e+37
    %v337 = vand.u32 %v310, 2147483648
    %v338 = vor.u32 1.1754944e-38, %v337
    %v339 = vsel %vm336, %v338, %v334
    %v340 = vmul.f32 %v304, %v339
    %v342 = vsel %vm292, %v325, 0
    %v345 = vsel %vm292, %v340, 0
    %347 = vmatpush.msra.mxu0 0.0
    %348 = vmatpush.msra.mxu0 0.0
    %349 = vmatpush.msra.mxu0 0.0
    %350 = vmatpush.msra.mxu0 0.0
    %351 = vmatpush.msra.mxu0 0.0
    %352 = vmatpush.msra.mxu0 0.0
    %353 = vmatpush.msra.mxu0 0.0
    %354 = vmatpush.msra.mxu0 0.0
    %355 = vmatpush.msra.mxu0 0.0
    %356 = vmatpush.msra.mxu0 0.0
    %357 = vmatpush.msra.mxu0 0.0
    %358 = vmatpush.msra.mxu0 0.0
    %359 = vmatpush.msra.mxu0 0.0
    %360 = vmatpush.msra.mxu0 0.0
    %361 = vmatpush.msra.mxu0 %v250
    %362 = vmatpush.msra.mxu0 %v247
    %363 = vmatmul.f32.gmra.mxu0 %v342
    %v364 = vpop.f32.mrf.mxu0
    %v365 = vadd.f32 0.0, %v364
    %366 = vmatmul.f32.gmra.mxu0 %v345
    %v367 = vpop.f32.mrf.mxu0
    %v368 = vadd.f32 0.0, %v367
    %369 = vdwg.mxu0
    %v370 = vld [vmem:[%s10] sm:$0xff]
    %v371 = vld [vmem:[%s10 + $0x8] sm:$0xff]
    %v372 = vld [vmem:[%s10 + $0x10] sm:$0xff]
    %v373 = vld [vmem:[%s10 + $0x18] sm:$0xff]
    %s374 = scalar_lea.vmem %s4, 128
    %v375 = vld [vmem:[%s374] sm:$0xff]
    %v376 = vld [vmem:[%s374 + $0x8] sm:$0xff]
    %v377 = vld [vmem:[%s374 + $0x10] sm:$0xff]
    %v378 = vld [vmem:[%s374 + $0x18] sm:$0xff]
    %v379 = vld [vmem:[%s374 + $0x20] sm:$0xff]
    %v380 = vld [vmem:[%s374 + $0x28] sm:$0xff]
    %v381 = vld [vmem:[%s374 + $0x30] sm:$0xff]
    %v382 = vld [vmem:[%s374 + $0x38] sm:$0xff]
    %v383 = vld [vmem:[%s374 + $0x40] sm:$0xff]
    %v384 = vld [vmem:[%s374 + $0x48] sm:$0xff]
    %v385 = vld [vmem:[%s374 + $0x50] sm:$0xff]
    %v386 = vld [vmem:[%s374 + $0x58] sm:$0xff]
    %v387 = vld [vmem:[%s374 + $0x60] sm:$0xff]
    %v388 = vld [vmem:[%s374 + $0x68] sm:$0xff]
    %v389 = vld [vmem:[%s374 + $0x70] sm:$0xff]
    %v390 = vld [vmem:[%s374 + $0x78] sm:$0xff]
    %s391 = scalar_lea.vmem %s5, 1
    %v392 = vld [vmem:[%s391] sm:$0x1]
    %v394 = vperm.slane %v392, 0
    %396 = vmatpush.msra.mxu0 %v390
    %397 = vmatpush.msra.mxu0 %v389
    %398 = vmatpush.msra.mxu0 %v388
    %399 = vmatpush.msra.mxu0 %v387
    %400 = vmatpush.msra.mxu0 %v386
    %401 = vmatpush.msra.mxu0 %v385
    %402 = vmatpush.msra.mxu0 %v384
    %403 = vmatpush.msra.mxu0 %v383
    %404 = vmatpush.msra.mxu0 %v382
    %405 = vmatpush.msra.mxu0 %v381
    %406 = vmatpush.msra.mxu0 %v380
    %407 = vmatpush.msra.mxu0 %v379
    %408 = vmatpush.msra.mxu0 %v378
    %409 = vmatpush.msra.mxu0 %v377
    %410 = vmatpush.msra.mxu0 %v376
    %411 = vmatpush.msra.mxu0 %v375
    %412 = vmatmul.f32.gmra.mxu0 %v119
    %v413 = vpop.f32.mrf.mxu0
    %v414 = vadd.f32 %v394, %v413
    %415 = vmatmul.f32.gmra.mxu0 %v120
    %v416 = vpop.f32.mrf.mxu0
    %v417 = vadd.f32 %v394, %v416
    %418 = vdwg.mxu0
    %s419 = scalar_lea.vmem %s6, 128
    %v420 = vld [vmem:[%s419] sm:$0xff]
    %v421 = vld [vmem:[%s419 + $0x8] sm:$0xff]
    %v422 = vld [vmem:[%s419 + $0x10] sm:$0xff]
    %v423 = vld [vmem:[%s419 + $0x18] sm:$0xff]
    %v424 = vld [vmem:[%s419 + $0x20] sm:$0xff]
    %v425 = vld [vmem:[%s419 + $0x28] sm:$0xff]
    %v426 = vld [vmem:[%s419 + $0x30] sm:$0xff]
    %v427 = vld [vmem:[%s419 + $0x38] sm:$0xff]
    %v428 = vld [vmem:[%s419 + $0x40] sm:$0xff]
    %v429 = vld [vmem:[%s419 + $0x48] sm:$0xff]
    %v430 = vld [vmem:[%s419 + $0x50] sm:$0xff]
    %v431 = vld [vmem:[%s419 + $0x58] sm:$0xff]
    %v432 = vld [vmem:[%s419 + $0x60] sm:$0xff]
    %v433 = vld [vmem:[%s419 + $0x68] sm:$0xff]
    %v434 = vld [vmem:[%s419 + $0x70] sm:$0xff]
    %v435 = vld [vmem:[%s419 + $0x78] sm:$0xff]
    %s436 = scalar_lea.vmem %s7, 1
    %v437 = vld [vmem:[%s436] sm:$0x1]
    %v439 = vperm.slane %v437, 0
    %441 = vmatpush.msra.mxu0 %v435
    %442 = vmatpush.msra.mxu0 %v434
    %443 = vmatpush.msra.mxu0 %v433
    %444 = vmatpush.msra.mxu0 %v432
    %445 = vmatpush.msra.mxu0 %v431
    %446 = vmatpush.msra.mxu0 %v430
    %447 = vmatpush.msra.mxu0 %v429
    %448 = vmatpush.msra.mxu0 %v428
    %449 = vmatpush.msra.mxu0 %v427
    %450 = vmatpush.msra.mxu0 %v426
    %451 = vmatpush.msra.mxu0 %v425
    %452 = vmatpush.msra.mxu0 %v424
    %453 = vmatpush.msra.mxu0 %v423
    %454 = vmatpush.msra.mxu0 %v422
    %455 = vmatpush.msra.mxu0 %v421
    %456 = vmatpush.msra.mxu0 %v420
    %457 = vmatmul.f32.gmra.mxu0 %v119
    %v458 = vpop.f32.mrf.mxu0
    %v459 = vadd.f32 %v439, %v458
    %460 = vmatmul.f32.gmra.mxu0 %v120
    %v461 = vpop.f32.mrf.mxu0
    %v462 = vadd.f32 %v439, %v461
    %463 = vdwg.mxu0
    %s464 = scalar_lea.vmem %s8, 128
    %v465 = vld [vmem:[%s464] sm:$0xff]
    %v466 = vld [vmem:[%s464 + $0x8] sm:$0xff]
    %v467 = vld [vmem:[%s464 + $0x10] sm:$0xff]
    %v468 = vld [vmem:[%s464 + $0x18] sm:$0xff]
    %v469 = vld [vmem:[%s464 + $0x20] sm:$0xff]
    %v470 = vld [vmem:[%s464 + $0x28] sm:$0xff]
    %v471 = vld [vmem:[%s464 + $0x30] sm:$0xff]
    %v472 = vld [vmem:[%s464 + $0x38] sm:$0xff]
    %v473 = vld [vmem:[%s464 + $0x40] sm:$0xff]
    %v474 = vld [vmem:[%s464 + $0x48] sm:$0xff]
    %v475 = vld [vmem:[%s464 + $0x50] sm:$0xff]
    %v476 = vld [vmem:[%s464 + $0x58] sm:$0xff]
    %v477 = vld [vmem:[%s464 + $0x60] sm:$0xff]
    %v478 = vld [vmem:[%s464 + $0x68] sm:$0xff]
    %v479 = vld [vmem:[%s464 + $0x70] sm:$0xff]
    %v480 = vld [vmem:[%s464 + $0x78] sm:$0xff]
    %s481 = scalar_lea.vmem %s9, 1
    %v482 = vld [vmem:[%s481] sm:$0x1]
    %v484 = vperm.slane %v482, 0
    %486 = vmatpush.msra.mxu0 %v480
    %487 = vmatpush.msra.mxu0 %v479
    %488 = vmatpush.msra.mxu0 %v478
    %489 = vmatpush.msra.mxu0 %v477
    %490 = vmatpush.msra.mxu0 %v476
    %491 = vmatpush.msra.mxu0 %v475
    %492 = vmatpush.msra.mxu0 %v474
    %493 = vmatpush.msra.mxu0 %v473
    %494 = vmatpush.msra.mxu0 %v472
    %495 = vmatpush.msra.mxu0 %v471
    %496 = vmatpush.msra.mxu0 %v470
    %497 = vmatpush.msra.mxu0 %v469
    %498 = vmatpush.msra.mxu0 %v468
    %499 = vmatpush.msra.mxu0 %v467
    %500 = vmatpush.msra.mxu0 %v466
    %501 = vmatpush.msra.mxu0 %v465
    %502 = vmatmul.f32.gmra.mxu0 %v119
    %v503 = vpop.f32.mrf.mxu0
    %v504 = vadd.f32 %v484, %v503
    %505 = vmatmul.f32.gmra.mxu0 %v120
    %v506 = vpop.f32.mrf.mxu0
    %v507 = vadd.f32 %v484, %v506
    %508 = vdwg.mxu0
    %v510 = vsel %vm252, %v414, 0
    %v513 = vsel %vm252, %v417, 0
    %v516 = vsel %vm252, %v459, 0
    %v519 = vsel %vm252, %v462, 0
    %521 = vmatpush.xpose.msra.mxu0 0.0
    %522 = vmatpush.xpose.msra.mxu0 0.0
    %523 = vmatpush.xpose.msra.mxu0 0.0
    %524 = vmatpush.xpose.msra.mxu0 0.0
    %525 = vmatpush.xpose.msra.mxu0 0.0
    %526 = vmatpush.xpose.msra.mxu0 0.0
    %527 = vmatpush.xpose.msra.mxu0 0.0
    %528 = vmatpush.xpose.msra.mxu0 0.0
    %529 = vmatpush.xpose.msra.mxu0 0.0
    %530 = vmatpush.xpose.msra.mxu0 0.0
    %531 = vmatpush.xpose.msra.mxu0 0.0
    %532 = vmatpush.xpose.msra.mxu0 0.0
    %533 = vmatpush.xpose.msra.mxu0 0.0
    %534 = vmatpush.xpose.msra.mxu0 0.0
    %535 = vmatpush.xpose.msra.mxu0 %v519
    %536 = vmatpush.xpose.msra.mxu0 %v516
    %537 = vmatmul.f32.gmra.mxu0 %v510
    %v538 = vpop.f32.mrf.mxu0
    %v539 = vadd.f32 0.0, %v538
    %540 = vmatmul.f32.gmra.mxu0 %v513
    %v541 = vpop.f32.mrf.mxu0
    %v542 = vadd.f32 0.0, %v541
    %543 = vdwg.mxu0
    %v544 = vmul.f32 %v539, 0.17677669
    %v545 = vmul.f32 %v542, 0.17677669
    %v546 = vadd.f32 %v544, %v121
    %v547 = vadd.f32 %v545, %v122
    %v548 = vsel %vm292, %v546, -inf
    %549 = vmax.xlane.f32.xlu0 %v548
    %v550 = vpop.xlane.xlu0 %549
    %v551 = vsel %vm292, %v547, -inf
    %552 = vmax.xlane.f32.xlu0 %v551
    %v553 = vpop.xlane.xlu0 %552
    %v554 = vsub.f32 %v546, %v550
    %v555 = vsub.f32 %v547, %v553
    %v556 = vmul.f32 %v554, 1.442695
    %v557 = vpow.pop %v556
    %v558 = vmul.f32 %v555, 1.442695
    %v559 = vpow.pop %v558
    %v560 = vsel %vm292, %v557, 0.0
    %561 = vadd.xlane.f32.xlu0 %v560
    %v562 = vpop.xlane.xlu0 %561
    %v563 = vsel %vm292, %v559, 0.0
    %564 = vadd.xlane.f32.xlu0 %v563
    %v565 = vpop.xlane.xlu0 %564
    %v566 = vrcp.pop %v562
    %v567 = vmul.f32 %v562, %v566
    %v568 = vsub.f32 1.0, %v567
    %v569 = vmul.f32 %v566, %v568
    %v570 = vadd.f32 %v566, %v569
    %vm571 = vweird.f32 %v562
    %vm572 = vweird.f32 %v566
    %vm573 = vmor %vm571, %vm572
    %v574 = vsel %vm573, %v566, %v570
    %v575 = vand.u32 2147483647, %v562
    %vm576 = vcmp.eq.f32.partialorder %v575, 8.507059e+37
    %v577 = vand.u32 %v562, 2147483648
    %v578 = vor.u32 1.1754944e-38, %v577
    %v579 = vsel %vm576, %v578, %v574
    %v580 = vmul.f32 %v557, %v579
    %v581 = vrcp.pop %v565
    %v582 = vmul.f32 %v565, %v581
    %v583 = vsub.f32 1.0, %v582
    %v584 = vmul.f32 %v581, %v583
    %v585 = vadd.f32 %v581, %v584
    %vm586 = vweird.f32 %v565
    %vm587 = vweird.f32 %v581
    %vm588 = vmor %vm586, %vm587
    %v589 = vsel %vm588, %v581, %v585
    %v590 = vand.u32 2147483647, %v565
    %vm591 = vcmp.eq.f32.partialorder %v590, 8.507059e+37
    %v592 = vand.u32 %v565, 2147483648
    %v593 = vor.u32 1.1754944e-38, %v592
    %v594 = vsel %vm591, %v593, %v589
    %v595 = vmul.f32 %v559, %v594
    %v597 = vsel %vm292, %v580, 0
    %v600 = vsel %vm292, %v595, 0
    %602 = vmatpush.msra.mxu0 0.0
    %603 = vmatpush.msra.mxu0 0.0
    %604 = vmatpush.msra.mxu0 0.0
    %605 = vmatpush.msra.mxu0 0.0
    %606 = vmatpush.msra.mxu0 0.0
    %607 = vmatpush.msra.mxu0 0.0
    %608 = vmatpush.msra.mxu0 0.0
    %609 = vmatpush.msra.mxu0 0.0
    %610 = vmatpush.msra.mxu0 0.0
    %611 = vmatpush.msra.mxu0 0.0
    %612 = vmatpush.msra.mxu0 0.0
    %613 = vmatpush.msra.mxu0 0.0
    %614 = vmatpush.msra.mxu0 0.0
    %615 = vmatpush.msra.mxu0 0.0
    %616 = vmatpush.msra.mxu0 %v507
    %617 = vmatpush.msra.mxu0 %v504
    %618 = vmatmul.f32.gmra.mxu0 %v597
    %v619 = vpop.f32.mrf.mxu0
    %v620 = vadd.f32 0.0, %v619
    %621 = vmatmul.f32.gmra.mxu0 %v600
    %v622 = vpop.f32.mrf.mxu0
    %v623 = vadd.f32 0.0, %v622
    %624 = vdwg.mxu0
    %s625 = scalar_lea.vmem %s10, 32
    %v626 = vld [vmem:[%s625] sm:$0xff]
    %v627 = vld [vmem:[%s625 + $0x8] sm:$0xff]
    %v628 = vld [vmem:[%s625 + $0x10] sm:$0xff]
    %v629 = vld [vmem:[%s625 + $0x18] sm:$0xff]
    %v631 = vsel %vm252, %v620, 0
    %v634 = vsel %vm252, %v623, 0
    %636 = vmatpush.msra.mxu0 0.0
    %637 = vmatpush.msra.mxu0 0.0
    %638 = vmatpush.msra.mxu0 0.0
    %639 = vmatpush.msra.mxu0 0.0
    %640 = vmatpush.msra.mxu0 0.0
    %641 = vmatpush.msra.mxu0 0.0
    %642 = vmatpush.msra.mxu0 0.0
    %643 = vmatpush.msra.mxu0 0.0
    %644 = vmatpush.msra.mxu0 0.0
    %645 = vmatpush.msra.mxu0 0.0
    %646 = vmatpush.msra.mxu0 0.0
    %647 = vmatpush.msra.mxu0 0.0
    %648 = vmatpush.msra.mxu0 %v629
    %649 = vmatpush.msra.mxu0 %v628
    %650 = vmatpush.msra.mxu0 %v627
    %651 = vmatpush.msra.mxu0 %v626
    %652 = vmatmul.f32.gmra.mxu0 %v631
    %v653 = vpop.f32.mrf.mxu0
    %v654 = vadd.f32 0.0, %v653
    %655 = vmatmul.f32.gmra.mxu0 %v634
    %v656 = vpop.f32.mrf.mxu0
    %v657 = vadd.f32 0.0, %v656
    %658 = vdwg.mxu0
    %v660 = vsel %vm252, %v365, 0
    %v663 = vsel %vm252, %v368, 0
    %665 = vmatpush.msra.mxu0 0.0
    %666 = vmatpush.msra.mxu0 0.0
    %667 = vmatpush.msra.mxu0 0.0
    %668 = vmatpush.msra.mxu0 0.0
    %669 = vmatpush.msra.mxu0 0.0
    %670 = vmatpush.msra.mxu0 0.0
    %671 = vmatpush.msra.mxu0 0.0
    %672 = vmatpush.msra.mxu0 0.0
    %673 = vmatpush.msra.mxu0 0.0
    %674 = vmatpush.msra.mxu0 0.0
    %675 = vmatpush.msra.mxu0 0.0
    %676 = vmatpush.msra.mxu0 0.0
    %677 = vmatpush.msra.mxu0 %v373
    %678 = vmatpush.msra.mxu0 %v372
    %679 = vmatpush.msra.mxu0 %v371
    %680 = vmatpush.msra.mxu0 %v370
    %681 = vmatmul.f32.gmra.mxu0 %v660
    %v682 = vpop.f32.mrf.mxu0
    %v683 = vadd.f32 %v654, %v682
    %684 = vmatmul.f32.gmra.mxu0 %v663
    %v685 = vpop.f32.mrf.mxu0
    %v686 = vadd.f32 %v657, %v685
    %687 = vdwg.mxu0
    %s688 = scalar_lea.vmem %s4, 256
    %v689 = vld [vmem:[%s688] sm:$0xff]
    %v690 = vld [vmem:[%s688 + $0x8] sm:$0xff]
    %v691 = vld [vmem:[%s688 + $0x10] sm:$0xff]
    %v692 = vld [vmem:[%s688 + $0x18] sm:$0xff]
    %v693 = vld [vmem:[%s688 + $0x20] sm:$0xff]
    %v694 = vld [vmem:[%s688 + $0x28] sm:$0xff]
    %v695 = vld [vmem:[%s688 + $0x30] sm:$0xff]
    %v696 = vld [vmem:[%s688 + $0x38] sm:$0xff]
    %v697 = vld [vmem:[%s688 + $0x40] sm:$0xff]
    %v698 = vld [vmem:[%s688 + $0x48] sm:$0xff]
    %v699 = vld [vmem:[%s688 + $0x50] sm:$0xff]
    %v700 = vld [vmem:[%s688 + $0x58] sm:$0xff]
    %v701 = vld [vmem:[%s688 + $0x60] sm:$0xff]
    %v702 = vld [vmem:[%s688 + $0x68] sm:$0xff]
    %v703 = vld [vmem:[%s688 + $0x70] sm:$0xff]
    %v704 = vld [vmem:[%s688 + $0x78] sm:$0xff]
    %s705 = scalar_lea.vmem %s5, 2
    %v706 = vld [vmem:[%s705] sm:$0x1]
    %v708 = vperm.slane %v706, 0
    %710 = vmatpush.msra.mxu0 %v704
    %711 = vmatpush.msra.mxu0 %v703
    %712 = vmatpush.msra.mxu0 %v702
    %713 = vmatpush.msra.mxu0 %v701
    %714 = vmatpush.msra.mxu0 %v700
    %715 = vmatpush.msra.mxu0 %v699
    %716 = vmatpush.msra.mxu0 %v698
    %717 = vmatpush.msra.mxu0 %v697
    %718 = vmatpush.msra.mxu0 %v696
    %719 = vmatpush.msra.mxu0 %v695
    %720 = vmatpush.msra.mxu0 %v694
    %721 = vmatpush.msra.mxu0 %v693
    %722 = vmatpush.msra.mxu0 %v692
    %723 = vmatpush.msra.mxu0 %v691
    %724 = vmatpush.msra.mxu0 %v690
    %725 = vmatpush.msra.mxu0 %v689
    %726 = vmatmul.f32.gmra.mxu0 %v119
    %v727 = vpop.f32.mrf.mxu0
    %v728 = vadd.f32 %v708, %v727
    %729 = vmatmul.f32.gmra.mxu0 %v120
    %v730 = vpop.f32.mrf.mxu0
    %v731 = vadd.f32 %v708, %v730
    %732 = vdwg.mxu0
    %s733 = scalar_lea.vmem %s6, 256
    %v734 = vld [vmem:[%s733] sm:$0xff]
    %v735 = vld [vmem:[%s733 + $0x8] sm:$0xff]
    %v736 = vld [vmem:[%s733 + $0x10] sm:$0xff]
    %v737 = vld [vmem:[%s733 + $0x18] sm:$0xff]
    %v738 = vld [vmem:[%s733 + $0x20] sm:$0xff]
    %v739 = vld [vmem:[%s733 + $0x28] sm:$0xff]
    %v740 = vld [vmem:[%s733 + $0x30] sm:$0xff]
    %v741 = vld [vmem:[%s733 + $0x38] sm:$0xff]
    %v742 = vld [vmem:[%s733 + $0x40] sm:$0xff]
    %v743 = vld [vmem:[%s733 + $0x48] sm:$0xff]
    %v744 = vld [vmem:[%s733 + $0x50] sm:$0xff]
    %v745 = vld [vmem:[%s733 + $0x58] sm:$0xff]
    %v746 = vld [vmem:[%s733 + $0x60] sm:$0xff]
    %v747 = vld [vmem:[%s733 + $0x68] sm:$0xff]
    %v748 = vld [vmem:[%s733 + $0x70] sm:$0xff]
    %v749 = vld [vmem:[%s733 + $0x78] sm:$0xff]
    %s750 = scalar_lea.vmem %s7, 2
    %v751 = vld [vmem:[%s750] sm:$0x1]
    %v753 = vperm.slane %v751, 0
    %755 = vmatpush.msra.mxu0 %v749
    %756 = vmatpush.msra.mxu0 %v748
    %757 = vmatpush.msra.mxu0 %v747
    %758 = vmatpush.msra.mxu0 %v746
    %759 = vmatpush.msra.mxu0 %v745
    %760 = vmatpush.msra.mxu0 %v744
    %761 = vmatpush.msra.mxu0 %v743
    %762 = vmatpush.msra.mxu0 %v742
    %763 = vmatpush.msra.mxu0 %v741
    %764 = vmatpush.msra.mxu0 %v740
    %765 = vmatpush.msra.mxu0 %v739
    %766 = vmatpush.msra.mxu0 %v738
    %767 = vmatpush.msra.mxu0 %v737
    %768 = vmatpush.msra.mxu0 %v736
    %769 = vmatpush.msra.mxu0 %v735
    %770 = vmatpush.msra.mxu0 %v734
    %771 = vmatmul.f32.gmra.mxu0 %v119
    %v772 = vpop.f32.mrf.mxu0
    %v773 = vadd.f32 %v753, %v772
    %774 = vmatmul.f32.gmra.mxu0 %v120
    %v775 = vpop.f32.mrf.mxu0
    %v776 = vadd.f32 %v753, %v775
    %777 = vdwg.mxu0
    %s778 = scalar_lea.vmem %s8, 256
    %v779 = vld [vmem:[%s778] sm:$0xff]
    %v780 = vld [vmem:[%s778 + $0x8] sm:$0xff]
    %v781 = vld [vmem:[%s778 + $0x10] sm:$0xff]
    %v782 = vld [vmem:[%s778 + $0x18] sm:$0xff]
    %v783 = vld [vmem:[%s778 + $0x20] sm:$0xff]
    %v784 = vld [vmem:[%s778 + $0x28] sm:$0xff]
    %v785 = vld [vmem:[%s778 + $0x30] sm:$0xff]
    %v786 = vld [vmem:[%s778 + $0x38] sm:$0xff]
    %v787 = vld [vmem:[%s778 + $0x40] sm:$0xff]
    %v788 = vld [vmem:[%s778 + $0x48] sm:$0xff]
    %v789 = vld [vmem:[%s778 + $0x50] sm:$0xff]
    %v790 = vld [vmem:[%s778 + $0x58] sm:$0xff]
    %v791 = vld [vmem:[%s778 + $0x60] sm:$0xff]
    %v792 = vld [vmem:[%s778 + $0x68] sm:$0xff]
    %v793 = vld [vmem:[%s778 + $0x70] sm:$0xff]
    %v794 = vld [vmem:[%s778 + $0x78] sm:$0xff]
    %s795 = scalar_lea.vmem %s9, 2
    %v796 = vld [vmem:[%s795] sm:$0x1]
    %v798 = vperm.slane %v796, 0
    %800 = vmatpush.msra.mxu0 %v794
    %801 = vmatpush.msra.mxu0 %v793
    %802 = vmatpush.msra.mxu0 %v792
    %803 = vmatpush.msra.mxu0 %v791
    %804 = vmatpush.msra.mxu0 %v790
    %805 = vmatpush.msra.mxu0 %v789
    %806 = vmatpush.msra.mxu0 %v788
    %807 = vmatpush.msra.mxu0 %v787
    %808 = vmatpush.msra.mxu0 %v786
    %809 = vmatpush.msra.mxu0 %v785
    %810 = vmatpush.msra.mxu0 %v784
    %811 = vmatpush.msra.mxu0 %v783
    %812 = vmatpush.msra.mxu0 %v782
    %813 = vmatpush.msra.mxu0 %v781
    %814 = vmatpush.msra.mxu0 %v780
    %815 = vmatpush.msra.mxu0 %v779
    %816 = vmatmul.f32.gmra.mxu0 %v119
    %v817 = vpop.f32.mrf.mxu0
    %v818 = vadd.f32 %v798, %v817
    %819 = vmatmul.f32.gmra.mxu0 %v120
    %v820 = vpop.f32.mrf.mxu0
    %v821 = vadd.f32 %v798, %v820
    %822 = vdwg.mxu0
    %v824 = vsel %vm252, %v728, 0
    %v827 = vsel %vm252, %v731, 0
    %v830 = vsel %vm252, %v773, 0
    %v833 = vsel %vm252, %v776, 0
    %835 = vmatpush.xpose.msra.mxu0 0.0
    %836 = vmatpush.xpose.msra.mxu0 0.0
    %837 = vmatpush.xpose.msra.mxu0 0.0
    %838 = vmatpush.xpose.msra.mxu0 0.0
    %839 = vmatpush.xpose.msra.mxu0 0.0
    %840 = vmatpush.xpose.msra.mxu0 0.0
    %841 = vmatpush.xpose.msra.mxu0 0.0
    %842 = vmatpush.xpose.msra.mxu0 0.0
    %843 = vmatpush.xpose.msra.mxu0 0.0
    %844 = vmatpush.xpose.msra.mxu0 0.0
    %845 = vmatpush.xpose.msra.mxu0 0.0
    %846 = vmatpush.xpose.msra.mxu0 0.0
    %847 = vmatpush.xpose.msra.mxu0 0.0
    %848 = vmatpush.xpose.msra.mxu0 0.0
    %849 = vmatpush.xpose.msra.mxu0 %v833
    %850 = vmatpush.xpose.msra.mxu0 %v830
    %851 = vmatmul.f32.gmra.mxu0 %v824
    %v852 = vpop.f32.mrf.mxu0
    %v853 = vadd.f32 0.0, %v852
    %854 = vmatmul.f32.gmra.mxu0 %v827
    %v855 = vpop.f32.mrf.mxu0
    %v856 = vadd.f32 0.0, %v855
    %857 = vdwg.mxu0
    %v858 = vmul.f32 %v853, 0.17677669
    %v859 = vmul.f32 %v856, 0.17677669
    %v860 = vadd.f32 %v858, %v121
    %v861 = vadd.f32 %v859, %v122
    %v862 = vsel %vm292, %v860, -inf
    %863 = vmax.xlane.f32.xlu0 %v862
    %v864 = vpop.xlane.xlu0 %863
    %v865 = vsel %vm292, %v861, -inf
    %866 = vmax.xlane.f32.xlu0 %v865
    %v867 = vpop.xlane.xlu0 %866
    %v868 = vsub.f32 %v860, %v864
    %v869 = vsub.f32 %v861, %v867
    %v870 = vmul.f32 %v868, 1.442695
    %v871 = vpow.pop %v870
    %v872 = vmul.f32 %v869, 1.442695
    %v873 = vpow.pop %v872
    %v874 = vsel %vm292, %v871, 0.0
    %875 = vadd.xlane.f32.xlu0 %v874
    %v876 = vpop.xlane.xlu0 %875
    %v877 = vsel %vm292, %v873, 0.0
    %878 = vadd.xlane.f32.xlu0 %v877
    %v879 = vpop.xlane.xlu0 %878
    %v880 = vrcp.pop %v876
    %v881 = vmul.f32 %v876, %v880
    %v882 = vsub.f32 1.0, %v881
    %v883 = vmul.f32 %v880, %v882
    %v884 = vadd.f32 %v880, %v883
    %vm885 = vweird.f32 %v876
    %vm886 = vweird.f32 %v880
    %vm887 = vmor %vm885, %vm886
    %v888 = vsel %vm887, %v880, %v884
    %v889 = vand.u32 2147483647, %v876
    %vm890 = vcmp.eq.f32.partialorder %v889, 8.507059e+37
    %v891 = vand.u32 %v876, 2147483648
    %v892 = vor.u32 1.1754944e-38, %v891
    %v893 = vsel %vm890, %v892, %v888
    %v894 = vmul.f32 %v871, %v893
    %v895 = vrcp.pop %v879
    %v896 = vmul.f32 %v879, %v895
    %v897 = vsub.f32 1.0, %v896
    %v898 = vmul.f32 %v895, %v897
    %v899 = vadd.f32 %v895, %v898
    %vm900 = vweird.f32 %v879
    %vm901 = vweird.f32 %v895
    %vm902 = vmor %vm900, %vm901
    %v903 = vsel %vm902, %v895, %v899
    %v904 = vand.u32 2147483647, %v879
    %vm905 = vcmp.eq.f32.partialorder %v904, 8.507059e+37
    %v906 = vand.u32 %v879, 2147483648
    %v907 = vor.u32 1.1754944e-38, %v906
    %v908 = vsel %vm905, %v907, %v903
    %v909 = vmul.f32 %v873, %v908
    %v911 = vsel %vm292, %v894, 0
    %v914 = vsel %vm292, %v909, 0
    %916 = vmatpush.msra.mxu0 0.0
    %917 = vmatpush.msra.mxu0 0.0
    %918 = vmatpush.msra.mxu0 0.0
    %919 = vmatpush.msra.mxu0 0.0
    %920 = vmatpush.msra.mxu0 0.0
    %921 = vmatpush.msra.mxu0 0.0
    %922 = vmatpush.msra.mxu0 0.0
    %923 = vmatpush.msra.mxu0 0.0
    %924 = vmatpush.msra.mxu0 0.0
    %925 = vmatpush.msra.mxu0 0.0
    %926 = vmatpush.msra.mxu0 0.0
    %927 = vmatpush.msra.mxu0 0.0
    %928 = vmatpush.msra.mxu0 0.0
    %929 = vmatpush.msra.mxu0 0.0
    %930 = vmatpush.msra.mxu0 %v821
    %931 = vmatpush.msra.mxu0 %v818
    %932 = vmatmul.f32.gmra.mxu0 %v911
    %v933 = vpop.f32.mrf.mxu0
    %v934 = vadd.f32 0.0, %v933
    %935 = vmatmul.f32.gmra.mxu0 %v914
    %v936 = vpop.f32.mrf.mxu0
    %v937 = vadd.f32 0.0, %v936
    %938 = vdwg.mxu0
    %s939 = scalar_lea.vmem %s10, 64
    %v940 = vld [vmem:[%s939] sm:$0xff]
    %v941 = vld [vmem:[%s939 + $0x8] sm:$0xff]
    %v942 = vld [vmem:[%s939 + $0x10] sm:$0xff]
    %v943 = vld [vmem:[%s939 + $0x18] sm:$0xff]
    %v945 = vsel %vm252, %v934, 0
    %v948 = vsel %vm252, %v937, 0
    %950 = vmatpush.msra.mxu0 0.0
    %951 = vmatpush.msra.mxu0 0.0
    %952 = vmatpush.msra.mxu0 0.0
    %953 = vmatpush.msra.mxu0 0.0
    %954 = vmatpush.msra.mxu0 0.0
    %955 = vmatpush.msra.mxu0 0.0
    %956 = vmatpush.msra.mxu0 0.0
    %957 = vmatpush.msra.mxu0 0.0
    %958 = vmatpush.msra.mxu0 0.0
    %959 = vmatpush.msra.mxu0 0.0
    %960 = vmatpush.msra.mxu0 0.0
    %961 = vmatpush.msra.mxu0 0.0
    %962 = vmatpush.msra.mxu0 %v943
    %963 = vmatpush.msra.mxu0 %v942
    %964 = vmatpush.msra.mxu0 %v941
    %965 = vmatpush.msra.mxu0 %v940
    %966 = vmatmul.f32.gmra.mxu0 %v945
    %v967 = vpop.f32.mrf.mxu0
    %v968 = vadd.f32 0.0, %v967
    %969 = vmatmul.f32.gmra.mxu0 %v948
    %v970 = vpop.f32.mrf.mxu0
    %v971 = vadd.f32 0.0, %v970
    %972 = vdwg.mxu0
    %v973 = vadd.f32 %v683, %v968
    %v974 = vadd.f32 %v686, %v971
    %s975 = scalar_lea.vmem %s4, 384
    %v976 = vld [vmem:[%s975] sm:$0xff]
    %v977 = vld [vmem:[%s975 + $0x8] sm:$0xff]
    %v978 = vld [vmem:[%s975 + $0x10] sm:$0xff]
    %v979 = vld [vmem:[%s975 + $0x18] sm:$0xff]
    %v980 = vld [vmem:[%s975 + $0x20] sm:$0xff]
    %v981 = vld [vmem:[%s975 + $0x28] sm:$0xff]
    %v982 = vld [vmem:[%s975 + $0x30] sm:$0xff]
    %v983 = vld [vmem:[%s975 + $0x38] sm:$0xff]
    %v984 = vld [vmem:[%s975 + $0x40] sm:$0xff]
    %v985 = vld [vmem:[%s975 + $0x48] sm:$0xff]
    %v986 = vld [vmem:[%s975 + $0x50] sm:$0xff]
    %v987 = vld [vmem:[%s975 + $0x58] sm:$0xff]
    %v988 = vld [vmem:[%s975 + $0x60] sm:$0xff]
    %v989 = vld [vmem:[%s975 + $0x68] sm:$0xff]
    %v990 = vld [vmem:[%s975 + $0x70] sm:$0xff]
    %v991 = vld [vmem:[%s975 + $0x78] sm:$0xff]
    %s992 = scalar_lea.vmem %s5, 3
    %v993 = vld [vmem:[%s992] sm:$0x1]
    %v995 = vperm.slane %v993, 0
    %997 = vmatpush.msra.mxu0 %v991
    %998 = vmatpush.msra.mxu0 %v990
    %999 = vmatpush.msra.mxu0 %v989
    %1000 = vmatpush.msra.mxu0 %v988
    %1001 = vmatpush.msra.mxu0 %v987
    %1002 = vmatpush.msra.mxu0 %v986
    %1003 = vmatpush.msra.mxu0 %v985
    %1004 = vmatpush.msra.mxu0 %v984
    %1005 = vmatpush.msra.mxu0 %v983
    %1006 = vmatpush.msra.mxu0 %v982
    %1007 = vmatpush.msra.mxu0 %v981
    %1008 = vmatpush.msra.mxu0 %v980
    %1009 = vmatpush.msra.mxu0 %v979
    %1010 = vmatpush.msra.mxu0 %v978
    %1011 = vmatpush.msra.mxu0 %v977
    %1012 = vmatpush.msra.mxu0 %v976
    %1013 = vmatmul.f32.gmra.mxu0 %v119
    %v1014 = vpop.f32.mrf.mxu0
    %v1015 = vadd.f32 %v995, %v1014
    %1016 = vmatmul.f32.gmra.mxu0 %v120
    %v1017 = vpop.f32.mrf.mxu0
    %v1018 = vadd.f32 %v995, %v1017
    %1019 = vdwg.mxu0
    %s1020 = scalar_lea.vmem %s6, 384
    %v1021 = vld [vmem:[%s1020] sm:$0xff]
    %v1022 = vld [vmem:[%s1020 + $0x8] sm:$0xff]
    %v1023 = vld [vmem:[%s1020 + $0x10] sm:$0xff]
    %v1024 = vld [vmem:[%s1020 + $0x18] sm:$0xff]
    %v1025 = vld [vmem:[%s1020 + $0x20] sm:$0xff]
    %v1026 = vld [vmem:[%s1020 + $0x28] sm:$0xff]
    %v1027 = vld [vmem:[%s1020 + $0x30] sm:$0xff]
    %v1028 = vld [vmem:[%s1020 + $0x38] sm:$0xff]
    %v1029 = vld [vmem:[%s1020 + $0x40] sm:$0xff]
    %v1030 = vld [vmem:[%s1020 + $0x48] sm:$0xff]
    %v1031 = vld [vmem:[%s1020 + $0x50] sm:$0xff]
    %v1032 = vld [vmem:[%s1020 + $0x58] sm:$0xff]
    %v1033 = vld [vmem:[%s1020 + $0x60] sm:$0xff]
    %v1034 = vld [vmem:[%s1020 + $0x68] sm:$0xff]
    %v1035 = vld [vmem:[%s1020 + $0x70] sm:$0xff]
    %v1036 = vld [vmem:[%s1020 + $0x78] sm:$0xff]
    %s1037 = scalar_lea.vmem %s7, 3
    %v1038 = vld [vmem:[%s1037] sm:$0x1]
    %v1040 = vperm.slane %v1038, 0
    %1042 = vmatpush.msra.mxu0 %v1036
    %1043 = vmatpush.msra.mxu0 %v1035
    %1044 = vmatpush.msra.mxu0 %v1034
    %1045 = vmatpush.msra.mxu0 %v1033
    %1046 = vmatpush.msra.mxu0 %v1032
    %1047 = vmatpush.msra.mxu0 %v1031
    %1048 = vmatpush.msra.mxu0 %v1030
    %1049 = vmatpush.msra.mxu0 %v1029
    %1050 = vmatpush.msra.mxu0 %v1028
    %1051 = vmatpush.msra.mxu0 %v1027
    %1052 = vmatpush.msra.mxu0 %v1026
    %1053 = vmatpush.msra.mxu0 %v1025
    %1054 = vmatpush.msra.mxu0 %v1024
    %1055 = vmatpush.msra.mxu0 %v1023
    %1056 = vmatpush.msra.mxu0 %v1022
    %1057 = vmatpush.msra.mxu0 %v1021
    %1058 = vmatmul.f32.gmra.mxu0 %v119
    %v1059 = vpop.f32.mrf.mxu0
    %v1060 = vadd.f32 %v1040, %v1059
    %1061 = vmatmul.f32.gmra.mxu0 %v120
    %v1062 = vpop.f32.mrf.mxu0
    %v1063 = vadd.f32 %v1040, %v1062
    %1064 = vdwg.mxu0
    %s1065 = scalar_lea.vmem %s8, 384
    %v1066 = vld [vmem:[%s1065] sm:$0xff]
    %v1067 = vld [vmem:[%s1065 + $0x8] sm:$0xff]
    %v1068 = vld [vmem:[%s1065 + $0x10] sm:$0xff]
    %v1069 = vld [vmem:[%s1065 + $0x18] sm:$0xff]
    %v1070 = vld [vmem:[%s1065 + $0x20] sm:$0xff]
    %v1071 = vld [vmem:[%s1065 + $0x28] sm:$0xff]
    %v1072 = vld [vmem:[%s1065 + $0x30] sm:$0xff]
    %v1073 = vld [vmem:[%s1065 + $0x38] sm:$0xff]
    %v1074 = vld [vmem:[%s1065 + $0x40] sm:$0xff]
    %v1075 = vld [vmem:[%s1065 + $0x48] sm:$0xff]
    %v1076 = vld [vmem:[%s1065 + $0x50] sm:$0xff]
    %v1077 = vld [vmem:[%s1065 + $0x58] sm:$0xff]
    %v1078 = vld [vmem:[%s1065 + $0x60] sm:$0xff]
    %v1079 = vld [vmem:[%s1065 + $0x68] sm:$0xff]
    %v1080 = vld [vmem:[%s1065 + $0x70] sm:$0xff]
    %v1081 = vld [vmem:[%s1065 + $0x78] sm:$0xff]
    %s1082 = scalar_lea.vmem %s9, 3
    %v1083 = vld [vmem:[%s1082] sm:$0x1]
    %v1085 = vperm.slane %v1083, 0
    %1087 = vmatpush.msra.mxu0 %v1081
    %1088 = vmatpush.msra.mxu0 %v1080
    %1089 = vmatpush.msra.mxu0 %v1079
    %1090 = vmatpush.msra.mxu0 %v1078
    %1091 = vmatpush.msra.mxu0 %v1077
    %1092 = vmatpush.msra.mxu0 %v1076
    %1093 = vmatpush.msra.mxu0 %v1075
    %1094 = vmatpush.msra.mxu0 %v1074
    %1095 = vmatpush.msra.mxu0 %v1073
    %1096 = vmatpush.msra.mxu0 %v1072
    %1097 = vmatpush.msra.mxu0 %v1071
    %1098 = vmatpush.msra.mxu0 %v1070
    %1099 = vmatpush.msra.mxu0 %v1069
    %1100 = vmatpush.msra.mxu0 %v1068
    %1101 = vmatpush.msra.mxu0 %v1067
    %1102 = vmatpush.msra.mxu0 %v1066
    %1103 = vmatmul.f32.gmra.mxu0 %v119
    %v1104 = vpop.f32.mrf.mxu0
    %v1105 = vadd.f32 %v1085, %v1104
    %1106 = vmatmul.f32.gmra.mxu0 %v120
    %v1107 = vpop.f32.mrf.mxu0
    %v1108 = vadd.f32 %v1085, %v1107
    %1109 = vdwg.mxu0
    %v1111 = vsel %vm252, %v1015, 0
    %v1114 = vsel %vm252, %v1018, 0
    %v1117 = vsel %vm252, %v1060, 0
    %v1120 = vsel %vm252, %v1063, 0
    %1122 = vmatpush.xpose.msra.mxu0 0.0
    %1123 = vmatpush.xpose.msra.mxu0 0.0
    %1124 = vmatpush.xpose.msra.mxu0 0.0
    %1125 = vmatpush.xpose.msra.mxu0 0.0
    %1126 = vmatpush.xpose.msra.mxu0 0.0
    %1127 = vmatpush.xpose.msra.mxu0 0.0
    %1128 = vmatpush.xpose.msra.mxu0 0.0
    %1129 = vmatpush.xpose.msra.mxu0 0.0
    %1130 = vmatpush.xpose.msra.mxu0 0.0
    %1131 = vmatpush.xpose.msra.mxu0 0.0
    %1132 = vmatpush.xpose.msra.mxu0 0.0
    %1133 = vmatpush.xpose.msra.mxu0 0.0
    %1134 = vmatpush.xpose.msra.mxu0 0.0
    %1135 = vmatpush.xpose.msra.mxu0 0.0
    %1136 = vmatpush.xpose.msra.mxu0 %v1120
    %1137 = vmatpush.xpose.msra.mxu0 %v1117
    %1138 = vmatmul.f32.gmra.mxu0 %v1111
    %v1139 = vpop.f32.mrf.mxu0
    %v1140 = vadd.f32 0.0, %v1139
    %1141 = vmatmul.f32.gmra.mxu0 %v1114
    %v1142 = vpop.f32.mrf.mxu0
    %v1143 = vadd.f32 0.0, %v1142
    %1144 = vdwg.mxu0
    %v1145 = vmul.f32 %v1140, 0.17677669
    %v1146 = vmul.f32 %v1143, 0.17677669
    %v1147 = vadd.f32 %v1145, %v121
    %v1148 = vadd.f32 %v1146, %v122
    %v1149 = vsel %vm292, %v1147, -inf
    %1150 = vmax.xlane.f32.xlu0 %v1149
    %v1151 = vpop.xlane.xlu0 %1150
    %v1152 = vsel %vm292, %v1148, -inf
    %1153 = vmax.xlane.f32.xlu0 %v1152
    %v1154 = vpop.xlane.xlu0 %1153
    %v1155 = vsub.f32 %v1147, %v1151
    %v1156 = vsub.f32 %v1148, %v1154
    %v1157 = vmul.f32 %v1155, 1.442695
    %v1158 = vpow.pop %v1157
    %v1159 = vmul.f32 %v1156, 1.442695
    %v1160 = vpow.pop %v1159
    %v1161 = vsel %vm292, %v1158, 0.0
    %1162 = vadd.xlane.f32.xlu0 %v1161
    %v1163 = vpop.xlane.xlu0 %1162
    %v1164 = vsel %vm292, %v1160, 0.0
    %1165 = vadd.xlane.f32.xlu0 %v1164
    %v1166 = vpop.xlane.xlu0 %1165
    %v1167 = vrcp.pop %v1163
    %v1168 = vmul.f32 %v1163, %v1167
    %v1169 = vsub.f32 1.0, %v1168
    %v1170 = vmul.f32 %v1167, %v1169
    %v1171 = vadd.f32 %v1167, %v1170
    %vm1172 = vweird.f32 %v1163
    %vm1173 = vweird.f32 %v1167
    %vm1174 = vmor %vm1172, %vm1173
    %v1175 = vsel %vm1174, %v1167, %v1171
    %v1176 = vand.u32 2147483647, %v1163
    %vm1177 = vcmp.eq.f32.partialorder %v1176, 8.507059e+37
    %v1178 = vand.u32 %v1163, 2147483648
    %v1179 = vor.u32 1.1754944e-38, %v1178
    %v1180 = vsel %vm1177, %v1179, %v1175
    %v1181 = vmul.f32 %v1158, %v1180
    %v1182 = vrcp.pop %v1166
    %v1183 = vmul.f32 %v1166, %v1182
    %v1184 = vsub.f32 1.0, %v1183
    %v1185 = vmul.f32 %v1182, %v1184
    %v1186 = vadd.f32 %v1182, %v1185
    %vm1187 = vweird.f32 %v1166
    %vm1188 = vweird.f32 %v1182
    %vm1189 = vmor %vm1187, %vm1188
    %v1190 = vsel %vm1189, %v1182, %v1186
    %v1191 = vand.u32 2147483647, %v1166
    %vm1192 = vcmp.eq.f32.partialorder %v1191, 8.507059e+37
    %v1193 = vand.u32 %v1166, 2147483648
    %v1194 = vor.u32 1.1754944e-38, %v1193
    %v1195 = vsel %vm1192, %v1194, %v1190
    %v1196 = vmul.f32 %v1160, %v1195
    %v1198 = vsel %vm292, %v1181, 0
    %v1201 = vsel %vm292, %v1196, 0
    %1203 = vmatpush.msra.mxu0 0.0
    %1204 = vmatpush.msra.mxu0 0.0
    %1205 = vmatpush.msra.mxu0 0.0
    %1206 = vmatpush.msra.mxu0 0.0
    %1207 = vmatpush.msra.mxu0 0.0
    %1208 = vmatpush.msra.mxu0 0.0
    %1209 = vmatpush.msra.mxu0 0.0
    %1210 = vmatpush.msra.mxu0 0.0
    %1211 = vmatpush.msra.mxu0 0.0
    %1212 = vmatpush.msra.mxu0 0.0
    %1213 = vmatpush.msra.mxu0 0.0
    %1214 = vmatpush.msra.mxu0 0.0
    %1215 = vmatpush.msra.mxu0 0.0
    %1216 = vmatpush.msra.mxu0 0.0
    %1217 = vmatpush.msra.mxu0 %v1108
    %1218 = vmatpush.msra.mxu0 %v1105
    %1219 = vmatmul.f32.gmra.mxu0 %v1198
    %v1220 = vpop.f32.mrf.mxu0
    %v1221 = vadd.f32 0.0, %v1220
    %1222 = vmatmul.f32.gmra.mxu0 %v1201
    %v1223 = vpop.f32.mrf.mxu0
    %v1224 = vadd.f32 0.0, %v1223
    %1225 = vdwg.mxu0
    %s1226 = scalar_lea.vmem %s10, 96
    %v1227 = vld [vmem:[%s1226] sm:$0xff]
    %v1228 = vld [vmem:[%s1226 + $0x8] sm:$0xff]
    %v1229 = vld [vmem:[%s1226 + $0x10] sm:$0xff]
    %v1230 = vld [vmem:[%s1226 + $0x18] sm:$0xff]
    %v1232 = vsel %vm252, %v1221, 0
    %v1235 = vsel %vm252, %v1224, 0
    %1237 = vmatpush.msra.mxu0 0.0
    %1238 = vmatpush.msra.mxu0 0.0
    %1239 = vmatpush.msra.mxu0 0.0
    %1240 = vmatpush.msra.mxu0 0.0
    %1241 = vmatpush.msra.mxu0 0.0
    %1242 = vmatpush.msra.mxu0 0.0
    %1243 = vmatpush.msra.mxu0 0.0
    %1244 = vmatpush.msra.mxu0 0.0
    %1245 = vmatpush.msra.mxu0 0.0
    %1246 = vmatpush.msra.mxu0 0.0
    %1247 = vmatpush.msra.mxu0 0.0
    %1248 = vmatpush.msra.mxu0 0.0
    %1249 = vmatpush.msra.mxu0 %v1230
    %1250 = vmatpush.msra.mxu0 %v1229
    %1251 = vmatpush.msra.mxu0 %v1228
    %1252 = vmatpush.msra.mxu0 %v1227
    %1253 = vmatmul.f32.gmra.mxu0 %v1232
    %v1254 = vpop.f32.mrf.mxu0
    %v1255 = vadd.f32 0.0, %v1254
    %1256 = vmatmul.f32.gmra.mxu0 %v1235
    %v1257 = vpop.f32.mrf.mxu0
    %v1258 = vadd.f32 0.0, %v1257
    %1259 = vdwg.mxu0
    %v1260 = vadd.f32 %v973, %v1255
    %v1261 = vadd.f32 %v974, %v1258
    %v1262 = vadd.f32 %v60, %v1260
    %v1263 = vadd.f32 %v61, %v1261
    %v1264 = vld [vmem:[%s11] sm:$0x1]
    %v1266 = vperm.slane %v1264, 0
    %v1268 = vadd.f32 %v1262, %v1266
    %v1269 = vadd.f32 %v1263, %v1266
    %v1270 = vld [vmem:[%s12] sm:$0x1]
    %v1271 = vld [vmem:[%s13] sm:$0x1]
    %1272 = vadd.xlane.f32.xlu0 %v1268
    %v1273 = vpop.xlane.xlu0 %1272
    %1274 = vadd.xlane.f32.xlu0 %v1269
    %v1275 = vpop.xlane.xlu0 %1274
    %v1276 = vmul.f32 %v1273, %v74
    %v1277 = vmul.f32 %v1275, %v74
    %v1278 = vsub.f32 %v1268, %v1276
    %v1279 = vsub.f32 %v1269, %v1277
    %v1280 = vmul.f32 %v1278, %v1278
    %v1281 = vmul.f32 %v1279, %v1279
    %1282 = vadd.xlane.f32.xlu0 %v1280
    %v1283 = vpop.xlane.xlu0 %1282
    %1284 = vadd.xlane.f32.xlu0 %v1281
    %v1285 = vpop.xlane.xlu0 %1284
    %v1286 = vmul.f32 %v1283, %v74
    %v1287 = vmul.f32 %v1285, %v74
    %v1288 = vadd.f32 %v1286, 1e-05
    %v1289 = vadd.f32 %v1287, 1e-05
    %v1290 = vrsqrt.pop %v1288
    %v1291 = vmul.f32 %v1290, %v1288
    %v1292 = vmul.f32 %v1291, %v1290
    %v1293 = vmul.f32 0.5, %v1292
    %v1294 = vsub.f32 1.5, %v1293
    %v1295 = vmul.f32 %v1290, %v1294
    %vm1296 = vweird.f32 %v1288
    %vm1297 = vweird.f32 %v1290
    %vm1298 = vmor %vm1296, %vm1297
    %v1299 = vsel %vm1298, %v1290, %v1295
    %v1300 = vrsqrt.pop %v1289
    %v1301 = vmul.f32 %v1300, %v1289
    %v1302 = vmul.f32 %v1301, %v1300
    %v1303 = vmul.f32 0.5, %v1302
    %v1304 = vsub.f32 1.5, %v1303
    %v1305 = vmul.f32 %v1300, %v1304
    %vm1306 = vweird.f32 %v1289
    %vm1307 = vweird.f32 %v1300
    %vm1308 = vmor %vm1306, %vm1307
    %v1309 = vsel %vm1308, %v1300, %v1305
    %v1310 = vmul.f32 %v1278, %v1299
    %v1311 = vmul.f32 %v1279, %v1309
    %v1313 = vperm.slane %v1270, 0
    %v1315 = vmul.f32 %v1310, %v1313
    %v1316 = vmul.f32 %v1311, %v1313
    %v1318 = vperm.slane %v1271, 0
    %v1320 = vadd.f32 %v1315, %v1318
    %v1321 = vadd.f32 %v1316, %v1318
    %v1322 = vld [vmem:[%s14] sm:$0xff]
    %v1323 = vld [vmem:[%s14 + $0x8] sm:$0xff]
    %v1324 = vld [vmem:[%s14 + $0x10] sm:$0xff]
    %v1325 = vld [vmem:[%s14 + $0x18] sm:$0xff]
    %v1326 = vld [vmem:[%s14 + $0x20] sm:$0xff]
    %v1327 = vld [vmem:[%s14 + $0x28] sm:$0xff]
    %v1328 = vld [vmem:[%s14 + $0x30] sm:$0xff]
    %v1329 = vld [vmem:[%s14 + $0x38] sm:$0xff]
    %v1330 = vld [vmem:[%s14 + $0x40] sm:$0xff]
    %v1331 = vld [vmem:[%s14 + $0x48] sm:$0xff]
    %v1332 = vld [vmem:[%s14 + $0x50] sm:$0xff]
    %v1333 = vld [vmem:[%s14 + $0x58] sm:$0xff]
    %v1334 = vld [vmem:[%s14 + $0x60] sm:$0xff]
    %v1335 = vld [vmem:[%s14 + $0x68] sm:$0xff]
    %v1336 = vld [vmem:[%s14 + $0x70] sm:$0xff]
    %v1337 = vld [vmem:[%s14 + $0x78] sm:$0xff]
    %v1338 = vld [vmem:[%s14 + $0x80] sm:$0xff]
    %v1339 = vld [vmem:[%s14 + $0x88] sm:$0xff]
    %v1340 = vld [vmem:[%s14 + $0x90] sm:$0xff]
    %v1341 = vld [vmem:[%s14 + $0x98] sm:$0xff]
    %v1342 = vld [vmem:[%s14 + $0xa0] sm:$0xff]
    %v1343 = vld [vmem:[%s14 + $0xa8] sm:$0xff]
    %v1344 = vld [vmem:[%s14 + $0xb0] sm:$0xff]
    %v1345 = vld [vmem:[%s14 + $0xb8] sm:$0xff]
    %v1346 = vld [vmem:[%s14 + $0xc0] sm:$0xff]
    %v1347 = vld [vmem:[%s14 + $0xc8] sm:$0xff]
    %v1348 = vld [vmem:[%s14 + $0xd0] sm:$0xff]
    %v1349 = vld [vmem:[%s14 + $0xd8] sm:$0xff]
    %v1350 = vld [vmem:[%s14 + $0xe0] sm:$0xff]
    %v1351 = vld [vmem:[%s14 + $0xe8] sm:$0xff]
    %v1352 = vld [vmem:[%s14 + $0xf0] sm:$0xff]
    %v1353 = vld [vmem:[%s14 + $0xf8] sm:$0xff]
    %v1354 = vld [vmem:[%s14 + $0x100] sm:$0xff]
    %v1355 = vld [vmem:[%s14 + $0x108] sm:$0xff]
    %v1356 = vld [vmem:[%s14 + $0x110] sm:$0xff]
    %v1357 = vld [vmem:[%s14 + $0x118] sm:$0xff]
    %v1358 = vld [vmem:[%s14 + $0x120] sm:$0xff]
    %v1359 = vld [vmem:[%s14 + $0x128] sm:$0xff]
    %v1360 = vld [vmem:[%s14 + $0x130] sm:$0xff]
    %v1361 = vld [vmem:[%s14 + $0x138] sm:$0xff]
    %v1362 = vld [vmem:[%s14 + $0x140] sm:$0xff]
    %v1363 = vld [vmem:[%s14 + $0x148] sm:$0xff]
    %v1364 = vld [vmem:[%s14 + $0x150] sm:$0xff]
    %v1365 = vld [vmem:[%s14 + $0x158] sm:$0xff]
    %v1366 = vld [vmem:[%s14 + $0x160] sm:$0xff]
    %v1367 = vld [vmem:[%s14 + $0x168] sm:$0xff]
    %v1368 = vld [vmem:[%s14 + $0x170] sm:$0xff]
    %v1369 = vld [vmem:[%s14 + $0x178] sm:$0xff]
    %v1370 = vld [vmem:[%s14 + $0x180] sm:$0xff]
    %v1371 = vld [vmem:[%s14 + $0x188] sm:$0xff]
    %v1372 = vld [vmem:[%s14 + $0x190] sm:$0xff]
    %v1373 = vld [vmem:[%s14 + $0x198] sm:$0xff]
    %v1374 = vld [vmem:[%s14 + $0x1a0] sm:$0xff]
    %v1375 = vld [vmem:[%s14 + $0x1a8] sm:$0xff]
    %v1376 = vld [vmem:[%s14 + $0x1b0] sm:$0xff]
    %v1377 = vld [vmem:[%s14 + $0x1b8] sm:$0xff]
    %v1378 = vld [vmem:[%s14 + $0x1c0] sm:$0xff]
    %v1379 = vld [vmem:[%s14 + $0x1c8] sm:$0xff]
    %v1380 = vld [vmem:[%s14 + $0x1d0] sm:$0xff]
    %v1381 = vld [vmem:[%s14 + $0x1d8] sm:$0xff]
    %v1382 = vld [vmem:[%s14 + $0x1e0] sm:$0xff]
    %v1383 = vld [vmem:[%s14 + $0x1e8] sm:$0xff]
    %v1384 = vld [vmem:[%s14 + $0x1f0] sm:$0xff]
    %v1385 = vld [vmem:[%s14 + $0x1f8] sm:$0xff]
    %v1386 = vld [vmem:[%s15] sm:$0xf]
    %v1388 = vperm.slane %v1386, 0
    %v1389 = vperm.slane %v1386, 1
    %v1390 = vperm.slane %v1386, 2
    %v1391 = vperm.slane %v1386, 3
    %1396 = vmatpush.msra.mxu0 %v1382
    %1397 = vmatpush.msra.mxu0 %v1378
    %1398 = vmatpush.msra.mxu0 %v1374
    %1399 = vmatpush.msra.mxu0 %v1370
    %1400 = vmatpush.msra.mxu0 %v1366
    %1401 = vmatpush.msra.mxu0 %v1362
    %1402 = vmatpush.msra.mxu0 %v1358
    %1403 = vmatpush.msra.mxu0 %v1354
    %1404 = vmatpush.msra.mxu0 %v1350
    %1405 = vmatpush.msra.mxu0 %v1346
    %1406 = vmatpush.msra.mxu0 %v1342
    %1407 = vmatpush.msra.mxu0 %v1338
    %1408 = vmatpush.msra.mxu0 %v1334
    %1409 = vmatpush.msra.mxu0 %v1330
    %1410 = vmatpush.msra.mxu0 %v1326
    %1411 = vmatpush.msra.mxu0 %v1322
    %1412 = vmatmul.f32.gmra.mxu0 %v1320
    %v1413 = vpop.f32.mrf.mxu0
    %v1414 = vadd.f32 %v1388, %v1413
    %1415 = vmatmul.f32.gmra.mxu0 %v1321
    %v1416 = vpop.f32.mrf.mxu0
    %v1417 = vadd.f32 %v1388, %v1416
    %1418 = vdwg.mxu0
    %1419 = vmatpush.msra.mxu0 %v1383
    %1420 = vmatpush.msra.mxu0 %v1379
    %1421 = vmatpush.msra.mxu0 %v1375
    %1422 = vmatpush.msra.mxu0 %v1371
    %1423 = vmatpush.msra.mxu0 %v1367
    %1424 = vmatpush.msra.mxu0 %v1363
    %1425 = vmatpush.msra.mxu0 %v1359
    %1426 = vmatpush.msra.mxu0 %v1355
    %1427 = vmatpush.msra.mxu0 %v1351
    %1428 = vmatpush.msra.mxu0 %v1347
    %1429 = vmatpush.msra.mxu0 %v1343
    %1430 = vmatpush.msra.mxu0 %v1339
    %1431 = vmatpush.msra.mxu0 %v1335
    %1432 = vmatpush.msra.mxu0 %v1331
    %1433 = vmatpush.msra.mxu0 %v1327
    %1434 = vmatpush.msra.mxu0 %v1323
    %1435 = vmatmul.f32.gmra.mxu0 %v1320
    %v1436 = vpop.f32.mrf.mxu0
    %v1437 = vadd.f32 %v1389, %v1436
    %1438 = vmatmul.f32.gmra.mxu0 %v1321
    %v1439 = vpop.f32.mrf.mxu0
    %v1440 = vadd.f32 %v1389, %v1439
    %1441 = vdwg.mxu0
    %1442 = vmatpush.msra.mxu0 %v1384
    %1443 = vmatpush.msra.mxu0 %v1380
    %1444 = vmatpush.msra.mxu0 %v1376
    %1445 = vmatpush.msra.mxu0 %v1372
    %1446 = vmatpush.msra.mxu0 %v1368
    %1447 = vmatpush.msra.mxu0 %v1364
    %1448 = vmatpush.msra.mxu0 %v1360
    %1449 = vmatpush.msra.mxu0 %v1356
    %1450 = vmatpush.msra.mxu0 %v1352
    %1451 = vmatpush.msra.mxu0 %v1348
    %1452 = vmatpush.msra.mxu0 %v1344
    %1453 = vmatpush.msra.mxu0 %v1340
    %1454 = vmatpush.msra.mxu0 %v1336
    %1455 = vmatpush.msra.mxu0 %v1332
    %1456 = vmatpush.msra.mxu0 %v1328
    %1457 = vmatpush.msra.mxu0 %v1324
    %1458 = vmatmul.f32.gmra.mxu0 %v1320
    %v1459 = vpop.f32.mrf.mxu0
    %v1460 = vadd.f32 %v1390, %v1459
    %1461 = vmatmul.f32.gmra.mxu0 %v1321
    %v1462 = vpop.f32.mrf.mxu0
    %v1463 = vadd.f32 %v1390, %v1462
    %1464 = vdwg.mxu0
    %1465 = vmatpush.msra.mxu0 %v1385
    %1466 = vmatpush.msra.mxu0 %v1381
    %1467 = vmatpush.msra.mxu0 %v1377
    %1468 = vmatpush.msra.mxu0 %v1373
    %1469 = vmatpush.msra.mxu0 %v1369
    %1470 = vmatpush.msra.mxu0 %v1365
    %1471 = vmatpush.msra.mxu0 %v1361
    %1472 = vmatpush.msra.mxu0 %v1357
    %1473 = vmatpush.msra.mxu0 %v1353
    %1474 = vmatpush.msra.mxu0 %v1349
    %1475 = vmatpush.msra.mxu0 %v1345
    %1476 = vmatpush.msra.mxu0 %v1341
    %1477 = vmatpush.msra.mxu0 %v1337
    %1478 = vmatpush.msra.mxu0 %v1333
    %1479 = vmatpush.msra.mxu0 %v1329
    %1480 = vmatpush.msra.mxu0 %v1325
    %1481 = vmatmul.f32.gmra.mxu0 %v1320
    %v1482 = vpop.f32.mrf.mxu0
    %v1483 = vadd.f32 %v1391, %v1482
    %1484 = vmatmul.f32.gmra.mxu0 %v1321
    %v1485 = vpop.f32.mrf.mxu0
    %v1486 = vadd.f32 %v1391, %v1485
    %1487 = vdwg.mxu0
    %v1488 = vmul.f32 %v1414, 0.5
    %v1489 = vmul.f32 %v1437, 0.5
    %v1490 = vmul.f32 %v1460, 0.5
    %v1491 = vmul.f32 %v1483, 0.5
    %v1492 = vmul.f32 %v1417, 0.5
    %v1493 = vmul.f32 %v1440, 0.5
    %v1494 = vmul.f32 %v1463, 0.5
    %v1495 = vmul.f32 %v1486, 0.5
    %v1496 = vmul.f32 %v1414, 0.044715
    %v1497 = vmul.f32 %v1437, 0.044715
    %v1498 = vmul.f32 %v1460, 0.044715
    %v1499 = vmul.f32 %v1483, 0.044715
    %v1500 = vmul.f32 %v1417, 0.044715
    %v1501 = vmul.f32 %v1440, 0.044715
    %v1502 = vmul.f32 %v1463, 0.044715
    %v1503 = vmul.f32 %v1486, 0.044715
    %v1504 = vmul.f32 %v1496, %v1414
    %v1505 = vmul.f32 %v1497, %v1437
    %v1506 = vmul.f32 %v1498, %v1460
    %v1507 = vmul.f32 %v1499, %v1483
    %v1508 = vmul.f32 %v1500, %v1417
    %v1509 = vmul.f32 %v1501, %v1440
    %v1510 = vmul.f32 %v1502, %v1463
    %v1511 = vmul.f32 %v1503, %v1486
    %v1512 = vmul.f32 %v1504, %v1414
    %v1513 = vmul.f32 %v1505, %v1437
    %v1514 = vmul.f32 %v1506, %v1460
    %v1515 = vmul.f32 %v1507, %v1483
    %v1516 = vmul.f32 %v1508, %v1417
    %v1517 = vmul.f32 %v1509, %v1440
    %v1518 = vmul.f32 %v1510, %v1463
    %v1519 = vmul.f32 %v1511, %v1486
    %v1520 = vadd.f32 %v1414, %v1512
    %v1521 = vadd.f32 %v1437, %v1513
    %v1522 = vadd.f32 %v1460, %v1514
    %v1523 = vadd.f32 %v1483, %v1515
    %v1524 = vadd.f32 %v1417, %v1516
    %v1525 = vadd.f32 %v1440, %v1517
    %v1526 = vadd.f32 %v1463, %v1518
    %v1527 = vadd.f32 %v1486, %v1519
    %v1528 = vmul.f32 %v1520, 0.7978846
    %v1529 = vmul.f32 %v1521, 0.7978846
    %v1530 = vmul.f32 %v1522, 0.7978846
    %v1531 = vmul.f32 %v1523, 0.7978846
    %v1532 = vmul.f32 %v1524, 0.7978846
    %v1533 = vmul.f32 %v1525, 0.7978846
    %v1534 = vmul.f32 %v1526, 0.7978846
    %v1535 = vmul.f32 %v1527, 0.7978846
    %v1536 = vtanh.pop %v1528
    %v1537 = vtanh.pop %v1529
    %v1538 = vtanh.pop %v1530
    %v1539 = vtanh.pop %v1531
    %v1540 = vtanh.pop %v1532
    %v1541 = vtanh.pop %v1533
    %v1542 = vtanh.pop %v1534
    %v1543 = vtanh.pop %v1535
    %v1544 = vadd.f32 %v1536, 1.0
    %v1545 = vadd.f32 %v1537, 1.0
    %v1546 = vadd.f32 %v1538, 1.0
    %v1547 = vadd.f32 %v1539, 1.0
    %v1548 = vadd.f32 %v1540, 1.0
    %v1549 = vadd.f32 %v1541, 1.0
    %v1550 = vadd.f32 %v1542, 1.0
    %v1551 = vadd.f32 %v1543, 1.0
    %v1552 = vmul.f32 %v1488, %v1544
    %v1553 = vmul.f32 %v1489, %v1545
    %v1554 = vmul.f32 %v1490, %v1546
    %v1555 = vmul.f32 %v1491, %v1547
    %v1556 = vmul.f32 %v1492, %v1548
    %v1557 = vmul.f32 %v1493, %v1549
    %v1558 = vmul.f32 %v1494, %v1550
    %v1559 = vmul.f32 %v1495, %v1551
    %v1560 = vld [vmem:[%s16] sm:$0xff]
    %v1561 = vld [vmem:[%s16 + $0x8] sm:$0xff]
    %v1562 = vld [vmem:[%s16 + $0x10] sm:$0xff]
    %v1563 = vld [vmem:[%s16 + $0x18] sm:$0xff]
    %v1564 = vld [vmem:[%s16 + $0x20] sm:$0xff]
    %v1565 = vld [vmem:[%s16 + $0x28] sm:$0xff]
    %v1566 = vld [vmem:[%s16 + $0x30] sm:$0xff]
    %v1567 = vld [vmem:[%s16 + $0x38] sm:$0xff]
    %v1568 = vld [vmem:[%s16 + $0x40] sm:$0xff]
    %v1569 = vld [vmem:[%s16 + $0x48] sm:$0xff]
    %v1570 = vld [vmem:[%s16 + $0x50] sm:$0xff]
    %v1571 = vld [vmem:[%s16 + $0x58] sm:$0xff]
    %v1572 = vld [vmem:[%s16 + $0x60] sm:$0xff]
    %v1573 = vld [vmem:[%s16 + $0x68] sm:$0xff]
    %v1574 = vld [vmem:[%s16 + $0x70] sm:$0xff]
    %v1575 = vld [vmem:[%s16 + $0x78] sm:$0xff]
    %v1576 = vld [vmem:[%s16 + $0x80] sm:$0xff]
    %v1577 = vld [vmem:[%s16 + $0x88] sm:$0xff]
    %v1578 = vld [vmem:[%s16 + $0x90] sm:$0xff]
    %v1579 = vld [vmem:[%s16 + $0x98] sm:$0xff]
    %v1580 = vld [vmem:[%s16 + $0xa0] sm:$0xff]
    %v1581 = vld [vmem:[%s16 + $0xa8] sm:$0xff]
    %v1582 = vld [vmem:[%s16 + $0xb0] sm:$0xff]
    %v1583 = vld [vmem:[%s16 + $0xb8] sm:$0xff]
    %v1584 = vld [vmem:[%s16 + $0xc0] sm:$0xff]
    %v1585 = vld [vmem:[%s16 + $0xc8] sm:$0xff]
    %v1586 = vld [vmem:[%s16 + $0xd0] sm:$0xff]
    %v1587 = vld [vmem:[%s16 + $0xd8] sm:$0xff]
    %v1588 = vld [vmem:[%s16 + $0xe0] sm:$0xff]
    %v1589 = vld [vmem:[%s16 + $0xe8] sm:$0xff]
    %v1590 = vld [vmem:[%s16 + $0xf0] sm:$0xff]
    %v1591 = vld [vmem:[%s16 + $0xf8] sm:$0xff]
    %v1592 = vld [vmem:[%s16 + $0x100] sm:$0xff]
    %v1593 = vld [vmem:[%s16 + $0x108] sm:$0xff]
    %v1594 = vld [vmem:[%s16 + $0x110] sm:$0xff]
    %v1595 = vld [vmem:[%s16 + $0x118] sm:$0xff]
    %v1596 = vld [vmem:[%s16 + $0x120] sm:$0xff]
    %v1597 = vld [vmem:[%s16 + $0x128] sm:$0xff]
    %v1598 = vld [vmem:[%s16 + $0x130] sm:$0xff]
    %v1599 = vld [vmem:[%s16 + $0x138] sm:$0xff]
    %v1600 = vld [vmem:[%s16 + $0x140] sm:$0xff]
    %v1601 = vld [vmem:[%s16 + $0x148] sm:$0xff]
    %v1602 = vld [vmem:[%s16 + $0x150] sm:$0xff]
    %v1603 = vld [vmem:[%s16 + $0x158] sm:$0xff]
    %v1604 = vld [vmem:[%s16 + $0x160] sm:$0xff]
    %v1605 = vld [vmem:[%s16 + $0x168] sm:$0xff]
    %v1606 = vld [vmem:[%s16 + $0x170] sm:$0xff]
    %v1607 = vld [vmem:[%s16 + $0x178] sm:$0xff]
    %v1608 = vld [vmem:[%s16 + $0x180] sm:$0xff]
    %v1609 = vld [vmem:[%s16 + $0x188] sm:$0xff]
    %v1610 = vld [vmem:[%s16 + $0x190] sm:$0xff]
    %v1611 = vld [vmem:[%s16 + $0x198] sm:$0xff]
    %v1612 = vld [vmem:[%s16 + $0x1a0] sm:$0xff]
    %v1613 = vld [vmem:[%s16 + $0x1a8] sm:$0xff]
    %v1614 = vld [vmem:[%s16 + $0x1b0] sm:$0xff]
    %v1615 = vld [vmem:[%s16 + $0x1b8] sm:$0xff]
    %v1616 = vld [vmem:[%s16 + $0x1c0] sm:$0xff]
    %v1617 = vld [vmem:[%s16 + $0x1c8] sm:$0xff]
    %v1618 = vld [vmem:[%s16 + $0x1d0] sm:$0xff]
    %v1619 = vld [vmem:[%s16 + $0x1d8] sm:$0xff]
    %v1620 = vld [vmem:[%s16 + $0x1e0] sm:$0xff]
    %v1621 = vld [vmem:[%s16 + $0x1e8] sm:$0xff]
    %v1622 = vld [vmem:[%s16 + $0x1f0] sm:$0xff]
    %v1623 = vld [vmem:[%s16 + $0x1f8] sm:$0xff]
    %v1624 = vld [vmem:[%s17] sm:$0x1]
    %v1626 = vperm.slane %v1624, 0
    %1628 = vmatpush.msra.mxu0 %v1575
    %1629 = vmatpush.msra.mxu0 %v1574
    %1630 = vmatpush.msra.mxu0 %v1573
    %1631 = vmatpush.msra.mxu0 %v1572
    %1632 = vmatpush.msra.mxu0 %v1571
    %1633 = vmatpush.msra.mxu0 %v1570
    %1634 = vmatpush.msra.mxu0 %v1569
    %1635 = vmatpush.msra.mxu0 %v1568
    %1636 = vmatpush.msra.mxu0 %v1567
    %1637 = vmatpush.msra.mxu0 %v1566
    %1638 = vmatpush.msra.mxu0 %v1565
    %1639 = vmatpush.msra.mxu0 %v1564
    %1640 = vmatpush.msra.mxu0 %v1563
    %1641 = vmatpush.msra.mxu0 %v1562
    %1642 = vmatpush.msra.mxu0 %v1561
    %1643 = vmatpush.msra.mxu0 %v1560
    %1644 = vmatmul.f32.gmra.mxu0 %v1552
    %v1645 = vpop.f32.mrf.mxu0
    %v1646 = vadd.f32 %v1626, %v1645
    %1647 = vmatmul.f32.gmra.mxu0 %v1556
    %v1648 = vpop.f32.mrf.mxu0
    %v1649 = vadd.f32 %v1626, %v1648
    %1650 = vdwg.mxu0
    %1651 = vmatpush.msra.mxu0 %v1591
    %1652 = vmatpush.msra.mxu0 %v1590
    %1653 = vmatpush.msra.mxu0 %v1589
    %1654 = vmatpush.msra.mxu0 %v1588
    %1655 = vmatpush.msra.mxu0 %v1587
    %1656 = vmatpush.msra.mxu0 %v1586
    %1657 = vmatpush.msra.mxu0 %v1585
    %1658 = vmatpush.msra.mxu0 %v1584
    %1659 = vmatpush.msra.mxu0 %v1583
    %1660 = vmatpush.msra.mxu0 %v1582
    %1661 = vmatpush.msra.mxu0 %v1581
    %1662 = vmatpush.msra.mxu0 %v1580
    %1663 = vmatpush.msra.mxu0 %v1579
    %1664 = vmatpush.msra.mxu0 %v1578
    %1665 = vmatpush.msra.mxu0 %v1577
    %1666 = vmatpush.msra.mxu0 %v1576
    %1667 = vmatmul.f32.gmra.mxu0 %v1553
    %v1668 = vpop.f32.mrf.mxu0
    %v1669 = vadd.f32 %v1646, %v1668
    %1670 = vmatmul.f32.gmra.mxu0 %v1557
    %v1671 = vpop.f32.mrf.mxu0
    %v1672 = vadd.f32 %v1649, %v1671
    %1673 = vdwg.mxu0
    %1674 = vmatpush.msra.mxu0 %v1607
    %1675 = vmatpush.msra.mxu0 %v1606
    %1676 = vmatpush.msra.mxu0 %v1605
    %1677 = vmatpush.msra.mxu0 %v1604
    %1678 = vmatpush.msra.mxu0 %v1603
    %1679 = vmatpush.msra.mxu0 %v1602
    %1680 = vmatpush.msra.mxu0 %v1601
    %1681 = vmatpush.msra.mxu0 %v1600
    %1682 = vmatpush.msra.mxu0 %v1599
    %1683 = vmatpush.msra.mxu0 %v1598
    %1684 = vmatpush.msra.mxu0 %v1597
    %1685 = vmatpush.msra.mxu0 %v1596
    %1686 = vmatpush.msra.mxu0 %v1595
    %1687 = vmatpush.msra.mxu0 %v1594
    %1688 = vmatpush.msra.mxu0 %v1593
    %1689 = vmatpush.msra.mxu0 %v1592
    %1690 = vmatmul.f32.gmra.mxu0 %v1554
    %v1691 = vpop.f32.mrf.mxu0
    %v1692 = vadd.f32 %v1669, %v1691
    %1693 = vmatmul.f32.gmra.mxu0 %v1558
    %v1694 = vpop.f32.mrf.mxu0
    %v1695 = vadd.f32 %v1672, %v1694
    %1696 = vdwg.mxu0
    %1697 = vmatpush.msra.mxu0 %v1623
    %1698 = vmatpush.msra.mxu0 %v1622
    %1699 = vmatpush.msra.mxu0 %v1621
    %1700 = vmatpush.msra.mxu0 %v1620
    %1701 = vmatpush.msra.mxu0 %v1619
    %1702 = vmatpush.msra.mxu0 %v1618
    %1703 = vmatpush.msra.mxu0 %v1617
    %1704 = vmatpush.msra.mxu0 %v1616
    %1705 = vmatpush.msra.mxu0 %v1615
    %1706 = vmatpush.msra.mxu0 %v1614
    %1707 = vmatpush.msra.mxu0 %v1613
    %1708 = vmatpush.msra.mxu0 %v1612
    %1709 = vmatpush.msra.mxu0 %v1611
    %1710 = vmatpush.msra.mxu0 %v1610
    %1711 = vmatpush.msra.mxu0 %v1609
    %1712 = vmatpush.msra.mxu0 %v1608
    %1713 = vmatmul.f32.gmra.mxu0 %v1555
    %v1714 = vpop.f32.mrf.mxu0
    %v1715 = vadd.f32 %v1692, %v1714
    %1716 = vmatmul.f32.gmra.mxu0 %v1559
    %v1717 = vpop.f32.mrf.mxu0
    %v1718 = vadd.f32 %v1695, %v1717
    %1719 = vdwg.mxu0
    %v1720 = vadd.f32 %v1268, %v1715
    %v1721 = vadd.f32 %v1269, %v1718
    %1722 = vst [vmem:[#allocation2] sm:$0xff] %v1720
    %1723 = vst [vmem:[#allocation2 + $0x8] sm:$0xff] %v1721
    // Predicated region
    $region74: #{block_forward.1} parent=1 // pred_check
      _
    $region75: #{block_forward.1} parent=1 // pred_check_branch
      %1725 = sbr.rel (0) target = $region77
    $region76: #{block_forward.1} parent=1 // pred_region
      %1727 = vsyncadd [#allocation3], 0
      %s1728 = sshll.u32 [#allocation2], 4
      %s1729 = int_to_ptr.vmem [resolvable:$true] %s1728
      %s1730 = sshll.u32 %s18, 4
      %s1731 = int_to_ptr.hbm [resolvable:$true] %s1730
      %1736 = dma.vmem_to_hbm [thread:$0]  %s1729, 256, %s1731, [#allocation3], 128, 128, 8
    $region77: #{block_forward.1} parent=1 // pred_fallthru
      _
    // Predicated region
    $region78: #{block_forward.1} parent=1 // pred_check
      _
    $region79: #{block_forward.1} parent=1 // pred_check_branch
      %1738 = sbr.rel (0) target = $region81
    $region80: #{block_forward.1} parent=1 // pred_region
      %1740 = dma.done [#allocation3], 256
    $region81: #{block_forward.1} parent=1 // pred_fallthru
      _
    %1741 = vsyncpa [#allocation3], 1

</llo_original>
